<compile_context>
chip_gen: v7x
topology: tpu7x:2x2x1
jax: 0.10.0
libtpu: 0.0.40
codegen_flags: <defaults>
</compile_context>

<pallas_src>
import math

import jax
import jax.numpy as jnp
from jax.experimental import pallas as pl
from jax.experimental.pallas import tpu as pltpu

D_MODEL = 32
N_HEADS = 4
D_FF = 64
EPS = 1e-6


def _layer_norm(x, alpha, bias):
    # Custom-module LN: unbiased variance (ddof=1), eps added to std.
    # Exact divide for the LN denominator (accuracy feedback); softmax keeps
    # the approximate reciprocal.
    d = x.shape[-1]
    mean = jnp.mean(x, axis=-1, keepdims=True)
    diff = x - mean
    var = jnp.sum(diff * diff, axis=-1, keepdims=True) * (1.0 / (d - 1))
    return alpha * diff / (jnp.sqrt(var) + EPS) + bias


def encoder_block_kernel(
    x_ref, mask_bias_ref,
    wq_ref, wk_ref, wv_ref, wo_ref,
    ff_w1_ref, ff_b1_ref, ff_w2_ref, ff_b2_ref,
    ln_alpha_ref, ln_bias_ref,
    out_ref,
):
    x = x_ref[0]                                  # (S, D) f32 for this batch
    S, D = x.shape
    H = wq_ref.shape[0]

    xb = x.astype(jnp.bfloat16)                   # bf16 MXU operands
    mask_bias = mask_bias_ref[...]                # (S, S) f32 additive bias

    # Self-attention: static per-head loop. Head selection is a leading-axis
    # index on the prebuilt (H, D, dk)/(H, dk, D) weights — no lane-masked
    # slice / stack / concat relayout anywhere in the kernel.
    sa = jnp.zeros((S, D), jnp.float32)
    for h in range(H):
        # 1/sqrt(dk) is folded into wq at parameter-build time.
        q = jnp.dot(xb, wq_ref[h], preferred_element_type=jnp.float32)   # (S, dk)
        k = jnp.dot(xb, wk_ref[h], preferred_element_type=jnp.float32)   # (S, dk)
        v = jnp.dot(xb, wv_ref[h], preferred_element_type=jnp.float32)   # (S, dk)

        # NT-form QK^T (same dot_general form as the flash-attention pattern).
        s = jnp.einsum("qd,kd->qk",
                       q.astype(jnp.bfloat16), k.astype(jnp.bfloat16),
                       preferred_element_type=jnp.float32)               # (S, S)
        s = s + mask_bias                          # f32 mask add
        s = s - jnp.max(s, axis=-1, keepdims=True)
        p = jnp.exp(s)
        p = p * pl.reciprocal(jnp.sum(p, axis=-1, keepdims=True), approx=True)

        ctx = jnp.dot(p.astype(jnp.bfloat16), v.astype(jnp.bfloat16),
                      preferred_element_type=jnp.float32)                # (S, dk)
        # Merge heads by accumulating ctx_h @ Wo[h*dk:(h+1)*dk, :].
        sa = sa + jnp.dot(ctx.astype(jnp.bfloat16), wo_ref[h],
                          preferred_element_type=jnp.float32)            # (S, D)

    # Residual 0: x = LN(x + SelfAttn(x))
    y = _layer_norm(x + sa, ln_alpha_ref[0:1, :], ln_bias_ref[0:1, :])

    # Feed-forward (dropout is identity / unused in ResidualConnection).
    h1 = jnp.dot(y.astype(jnp.bfloat16), ff_w1_ref[...],
                 preferred_element_type=jnp.float32) + ff_b1_ref[...]
    h1 = jnp.maximum(h1, 0.0)
    ff = jnp.dot(h1.astype(jnp.bfloat16), ff_w2_ref[...],
                 preferred_element_type=jnp.float32) + ff_b2_ref[...]

    # Residual 1: x = LN(x + FFN(x))
    out_ref[0] = _layer_norm(y + ff, ln_alpha_ref[1:2, :], ln_bias_ref[1:2, :])


def build_encoder_params(params, src_mask):
    """One-time setup (hoisted out of the per-call path): head-split weights to
    (H, D, dk)/(H, dk, D), fold 1/sqrt(dk) into wq, cast matmul weights to
    bf16, and fold the 0/1 mask into an additive -1e9 bias."""
    D, H = D_MODEL, N_HEADS
    dk = D // H

    def heads_in(w):  # (D_in, D_out) -> (H, D_in, dk): head on the leading axis
        return jnp.transpose(w.reshape(D, H, dk), (1, 0, 2))

    return {
        "wq_h": heads_in(params["wq"] / math.sqrt(dk)).astype(jnp.bfloat16),
        "wk_h": heads_in(params["wk"]).astype(jnp.bfloat16),
        "wv_h": heads_in(params["wv"]).astype(jnp.bfloat16),
        "wo_h": params["wo"].reshape(H, dk, D).astype(jnp.bfloat16),
        "ff_w1": params["ff_w1"].astype(jnp.bfloat16),
        "ff_b1": params["ff_b1"].astype(jnp.float32),
        "ff_w2": params["ff_w2"].astype(jnp.bfloat16),
        "ff_b2": params["ff_b2"].astype(jnp.float32),
        "ln_alpha": params["ln_alpha"].astype(jnp.float32),
        "ln_bias": params["ln_bias"].astype(jnp.float32),
        "mask_bias": ((src_mask - 1.0) * 1e9).astype(jnp.float32),
    }


def encoder_block(x, built):
    B, S, D = x.shape
    H = N_HEADS
    dk = D // H

    grid_spec = pltpu.PrefetchScalarGridSpec(
        num_scalar_prefetch=0,
        grid=(B,),                                           # parallel over batch (2 TCs on v7x)
        in_specs=[
            pl.BlockSpec((1, S, D), lambda b: (b, 0, 0)),    # x (per-batch block)
            pl.BlockSpec((S, S), lambda b: (0, 0)),          # additive mask bias
            pl.BlockSpec((H, D, dk), lambda b: (0, 0, 0)),   # wq heads (scaled, bf16)
            pl.BlockSpec((H, D, dk), lambda b: (0, 0, 0)),   # wk heads
            pl.BlockSpec((H, D, dk), lambda b: (0, 0, 0)),   # wv heads
            pl.BlockSpec((H, dk, D), lambda b: (0, 0, 0)),   # wo heads
            pl.BlockSpec((D, D_FF), lambda b: (0, 0)),       # ff_w1
            pl.BlockSpec((1, D_FF), lambda b: (0, 0)),       # ff_b1
            pl.BlockSpec((D_FF, D), lambda b: (0, 0)),       # ff_w2
            pl.BlockSpec((1, D), lambda b: (0, 0)),          # ff_b2
            pl.BlockSpec((2, D), lambda b: (0, 0)),          # ln_alpha (2 norms)
            pl.BlockSpec((2, D), lambda b: (0, 0)),          # ln_bias
        ],
        out_specs=pl.BlockSpec((1, S, D), lambda b: (b, 0, 0)),
    )

    return pl.pallas_call(
        encoder_block_kernel,
        out_shape=jax.ShapeDtypeStruct((B, S, D), jnp.float32),
        grid_spec=grid_spec,
        compiler_params=pltpu.CompilerParams(dimension_semantics=("parallel",)),
    )(
        x, built["mask_bias"],
        built["wq_h"], built["wk_h"], built["wv_h"], built["wo_h"],
        built["ff_w1"], built["ff_b1"], built["ff_w2"], built["ff_b2"],
        built["ln_alpha"], built["ln_bias"],
    )


# ------------------- references (for validation) -------------------
def encoder_block_spec_ref(x, src_mask, p):
    """Faithful f32 reference of the PyTorch module (exact spec semantics)."""
    B, S, D = x.shape
    H, dk = N_HEADS, D // N_HEADS

    def ln(y, alpha, bias):
        mean = jnp.mean(y, axis=-1, keepdims=True)
        diff = y - mean
        var = jnp.sum(diff * diff, axis=-1, keepdims=True) / (D - 1)
        return alpha * diff / (jnp.sqrt(var) + EPS) + bias

    def one_batch(xb):                                       # (S, D)
        q = (xb @ p["wq"]).reshape(S, H, dk).transpose(1, 0, 2)
        k = (xb @ p["wk"]).reshape(S, H, dk).transpose(1, 0, 2)
        v = (xb @ p["wv"]).reshape(S, H, dk).transpose(1, 0, 2)
        scores = jnp.einsum("hqd,hkd->hqk", q, k) / math.sqrt(dk)
        scores = jnp.where(src_mask[None] == 0.0, -1e9, scores)
        attn = jax.nn.softmax(scores, axis=-1)
        ctx = jnp.einsum("hqk,hkd->hqd", attn, v).transpose(1, 0, 2).reshape(S, D)
        y = ln(xb + ctx @ p["wo"], p["ln_alpha"][0], p["ln_bias"][0])
        hid = jnp.maximum(y @ p["ff_w1"] + p["ff_b1"], 0.0)
        y = ln(y + hid @ p["ff_w2"] + p["ff_b2"], p["ln_alpha"][1], p["ln_bias"][1])
        return y

    return jax.vmap(one_batch)(x)


def encoder_block_match_ref(x, built):
    """Precision-matched reference: same op order and bf16 matmul-operand
    policy as the kernel (but exact softmax divide). Used for a tight check
    that the kernel implements its own algorithm correctly."""
    B, S, D = x.shape
    H = built["wq_h"].shape[0]
    bf16, f32 = jnp.bfloat16, jnp.float32

    def ln(y, alpha, bias):
        mean = jnp.mean(y, axis=-1, keepdims=True)
        diff = y - mean
        var = jnp.sum(diff * diff, axis=-1, keepdims=True) / (D - 1)
        return alpha * diff / (jnp.sqrt(var) + EPS) + bias

    outs = []
    for b in range(B):
        x32 = x[b]
        xb = x32.astype(bf16)
        sa = jnp.zeros((S, D), f32)
        for h in range(H):
            q = jnp.dot(xb, built["wq_h"][h], preferred_element_type=f32)
            k = jnp.dot(xb, built["wk_h"][h], preferred_element_type=f32)
            v = jnp.dot(xb, built["wv_h"][h], preferred_element_type=f32)
            s = jnp.einsum("qd,kd->qk", q.astype(bf16), k.astype(bf16),
                           preferred_element_type=f32) + built["mask_bias"]
            s = s - jnp.max(s, axis=-1, keepdims=True)
            p = jnp.exp(s)
            p = p / jnp.sum(p, axis=-1, keepdims=True)
            ctx = jnp.dot(p.astype(bf16), v.astype(bf16), preferred_element_type=f32)
            sa = sa + jnp.dot(ctx.astype(bf16), built["wo_h"][h],
                              preferred_element_type=f32)
        y = ln(x32 + sa, built["ln_alpha"][0], built["ln_bias"][0])
        h1 = jnp.maximum(
            jnp.dot(y.astype(bf16), built["ff_w1"], preferred_element_type=f32)
            + built["ff_b1"], 0.0)
        ff = jnp.dot(h1.astype(bf16), built["ff_w2"], preferred_element_type=f32) \
            + built["ff_b2"]
        outs.append(ln(y + ff, built["ln_alpha"][1], built["ln_bias"][1]))
    return jnp.stack(outs, axis=0)


if __name__ == "__main__":
    B, S = 2, 8

    key = jax.random.PRNGKey(0)
    ks = jax.random.split(key, 12)

    def w(k, shape, scale=0.1):
        return (scale * jax.random.normal(k, shape)).astype(jnp.float32)

    params = {
        # attention projections, pre-transposed to (in, out)
        "wq": w(ks[0], (D_MODEL, D_MODEL)),
        "wk": w(ks[1], (D_MODEL, D_MODEL)),
        "wv": w(ks[2], (D_MODEL, D_MODEL)),
        "wo": w(ks[3], (D_MODEL, D_MODEL)),
        # feed-forward
        "ff_w1": w(ks[4], (D_MODEL, D_FF)),
        "ff_b1": w(ks[5], (1, D_FF)),
        "ff_w2": w(ks[6], (D_FF, D_MODEL)),
        "ff_b2": w(ks[7], (1, D_MODEL)),
        # 2 layer norms (perturbed from ones/zeros init so slicing is tested)
        "ln_alpha": (1.0 + 0.1 * jax.random.normal(ks[8], (2, D_MODEL))).astype(jnp.float32),
        "ln_bias": (0.1 * jax.random.normal(ks[9], (2, D_MODEL))).astype(jnp.float32),
    }

    x = w(ks[10], (B, S, D_MODEL), scale=1.0)
    # padding-style source mask: last two key positions masked out for all queries
    src_mask = jnp.ones((S, S), jnp.float32).at[:, S - 2:].set(0.0)

    # One-time setup (hoisted weight packing / scaling / casting / mask bias).
    built = build_encoder_params(params, src_mask)

    out = encoder_block(x, built)
    out = jax.block_until_ready(out)
    assert out.shape == (B, S, D_MODEL)

    # Tight check: same algorithm / bf16-matmul policy as the kernel; only the
    # approximate softmax reciprocal and accumulation order differ.
    tight = encoder_block_match_ref(x, built)
    assert jnp.allclose(out, tight, rtol=3e-3, atol=3e-3), \
        "mismatch vs precision-matched reference"

    # Spec check: faithful f32 module semantics; the looser tolerance reflects
    # the deliberate bf16 rounding of matmul operands (performance feedback).
    spec = encoder_block_spec_ref(x, src_mask, params)
    assert jnp.allclose(out, spec, rtol=6e-2, atol=6e-2), \
        "mismatch vs f32 spec reference"

    print("KERNEL_OK")
</pallas_src>

<mosaic_0001>
module attributes {stable_mosaic.version = 11 : i64} {
  func.func @encoder_block_kernel(%arg0: i32, %arg1: memref<1x8x32xf32, #tpu.memory_space<vmem>>, %arg2: memref<8x8xf32, #tpu.memory_space<vmem>>, %arg3: memref<4x32x8xbf16, #tpu.memory_space<vmem>>, %arg4: memref<4x32x8xbf16, #tpu.memory_space<vmem>>, %arg5: memref<4x32x8xbf16, #tpu.memory_space<vmem>>, %arg6: memref<4x8x32xbf16, #tpu.memory_space<vmem>>, %arg7: memref<32x64xbf16, #tpu.memory_space<vmem>>, %arg8: memref<1x64xf32, #tpu.memory_space<vmem>>, %arg9: memref<64x32xbf16, #tpu.memory_space<vmem>>, %arg10: memref<1x32xf32, #tpu.memory_space<vmem>>, %arg11: memref<2x32xf32, #tpu.memory_space<vmem>>, %arg12: memref<2x32xf32, #tpu.memory_space<vmem>>, %arg13: memref<1x8x32xf32, #tpu.memory_space<vmem>>) attributes {dimension_semantics = [#tpu.dimension_semantics<parallel>], iteration_bounds = array<i64: 2>, scalar_prefetch = 0 : i64, scratch_operands = 0 : i64, tpu.core_type = #tpu.core_type<tc>, window_params = [{transform_indices = @transform_0, window_bounds = array<i64: 1, 8, 32>}, {pipeline_mode = #tpu.pipeline_mode<synchronous>, transform_indices = @transform_1, window_bounds = array<i64: 8, 8>}, {pipeline_mode = #tpu.pipeline_mode<synchronous>, transform_indices = @transform_2, window_bounds = array<i64: 4, 32, 8>}, {pipeline_mode = #tpu.pipeline_mode<synchronous>, transform_indices = @transform_3, window_bounds = array<i64: 4, 32, 8>}, {pipeline_mode = #tpu.pipeline_mode<synchronous>, transform_indices = @transform_4, window_bounds = array<i64: 4, 32, 8>}, {pipeline_mode = #tpu.pipeline_mode<synchronous>, transform_indices = @transform_5, window_bounds = array<i64: 4, 8, 32>}, {pipeline_mode = #tpu.pipeline_mode<synchronous>, transform_indices = @transform_6, window_bounds = array<i64: 32, 64>}, {pipeline_mode = #tpu.pipeline_mode<synchronous>, transform_indices = @transform_7, window_bounds = array<i64: 1, 64>}, {pipeline_mode = #tpu.pipeline_mode<synchronous>, transform_indices = @transform_8, window_bounds = array<i64: 64, 32>}, {pipeline_mode = #tpu.pipeline_mode<synchronous>, transform_indices = @transform_9, window_bounds = array<i64: 1, 32>}, {pipeline_mode = #tpu.pipeline_mode<synchronous>, transform_indices = @transform_10, window_bounds = array<i64: 2, 32>}, {pipeline_mode = #tpu.pipeline_mode<synchronous>, transform_indices = @transform_11, window_bounds = array<i64: 2, 32>}, {transform_indices = @transform_12, window_bounds = array<i64: 1, 8, 32>}]} {
    %c0 = arith.constant 0 : index
    %c0_0 = arith.constant 0 : index
    %c0_1 = arith.constant 0 : index
    %0 = vector.load %arg1[%c0, %c0_0, %c0_1] : memref<1x8x32xf32, #tpu.memory_space<vmem>>, vector<1x8x32xf32>
    %1 = vector.shape_cast %0 : vector<1x8x32xf32> to vector<8x32xf32>
    %2 = arith.truncf %1 : vector<8x32xf32> to vector<8x32xbf16>
    %c0_2 = arith.constant 0 : index
    %c0_3 = arith.constant 0 : index
    %3 = vector.load %arg2[%c0_2, %c0_3] : memref<8x8xf32, #tpu.memory_space<vmem>>, vector<8x8xf32>
    %cst = arith.constant 0.000000e+00 : f32
    %4 = vector.broadcast %cst : f32 to vector<8x32xf32>
    %c0_4 = arith.constant 0 : index
    %c0_5 = arith.constant 0 : index
    %c0_6 = arith.constant 0 : index
    %5 = vector.load %arg3[%c0_4, %c0_5, %c0_6] : memref<4x32x8xbf16, #tpu.memory_space<vmem>>, vector<1x32x8xbf16>
    %6 = vector.shape_cast %5 : vector<1x32x8xbf16> to vector<32x8xbf16>
    %cst_7 = arith.constant dense<0.000000e+00> : vector<8x8xf32>
    %7 = tpu.matmul %2, %6, %cst_7 {dimension_numbers = #tpu.dot_dimension_numbers<[1], [0], [0], [1], [0, 0, 1, 1], [], []>} : vector<8x32xbf16>, vector<32x8xbf16>, vector<8x8xf32> -> vector<8x8xf32>
    %c0_8 = arith.constant 0 : index
    %c0_9 = arith.constant 0 : index
    %c0_10 = arith.constant 0 : index
    %8 = vector.load %arg4[%c0_8, %c0_9, %c0_10] : memref<4x32x8xbf16, #tpu.memory_space<vmem>>, vector<1x32x8xbf16>
    %9 = vector.shape_cast %8 : vector<1x32x8xbf16> to vector<32x8xbf16>
    %cst_11 = arith.constant dense<0.000000e+00> : vector<8x8xf32>
    %10 = tpu.matmul %2, %9, %cst_11 {dimension_numbers = #tpu.dot_dimension_numbers<[1], [0], [0], [1], [0, 0, 1, 1], [], []>} : vector<8x32xbf16>, vector<32x8xbf16>, vector<8x8xf32> -> vector<8x8xf32>
    %c0_12 = arith.constant 0 : index
    %c0_13 = arith.constant 0 : index
    %c0_14 = arith.constant 0 : index
    %11 = vector.load %arg5[%c0_12, %c0_13, %c0_14] : memref<4x32x8xbf16, #tpu.memory_space<vmem>>, vector<1x32x8xbf16>
    %12 = vector.shape_cast %11 : vector<1x32x8xbf16> to vector<32x8xbf16>
    %cst_15 = arith.constant dense<0.000000e+00> : vector<8x8xf32>
    %13 = tpu.matmul %2, %12, %cst_15 {dimension_numbers = #tpu.dot_dimension_numbers<[1], [0], [0], [1], [0, 0, 1, 1], [], []>} : vector<8x32xbf16>, vector<32x8xbf16>, vector<8x8xf32> -> vector<8x8xf32>
    %14 = arith.truncf %7 : vector<8x8xf32> to vector<8x8xbf16>
    %15 = arith.truncf %10 : vector<8x8xf32> to vector<8x8xbf16>
    "tpu.trace_start"() <{level = 10 : i32, message = "qd,kd->qk"}> : () -> ()
    %cst_16 = arith.constant dense<0.000000e+00> : vector<8x8xf32>
    %16 = tpu.matmul %14, %15, %cst_16 {dimension_numbers = #tpu.dot_dimension_numbers<[1], [1], [0], [0], [0, 0, 1, 0], [], []>} : vector<8x8xbf16>, vector<8x8xbf16>, vector<8x8xf32> -> vector<8x8xf32>
    "tpu.trace_stop"() : () -> ()
    %17 = arith.addf %16, %3 : vector<8x8xf32>
    %cst_17 = arith.constant dense<0xFF800000> : vector<8xf32>
    %18 = vector.multi_reduction <maximumf>, %17, %cst_17 [1] : vector<8x8xf32> to vector<8xf32>
    %19 = vector.shape_cast %18 : vector<8xf32> to vector<8x1xf32>
    %20 = vector.broadcast %19 : vector<8x1xf32> to vector<8x8xf32>
    %21 = arith.subf %17, %20 : vector<8x8xf32>
    %22 = math.exp %21 : vector<8x8xf32>
    %cst_18 = arith.constant dense<0.000000e+00> : vector<8xf32>
    %23 = vector.multi_reduction <add>, %22, %cst_18 [1] : vector<8x8xf32> to vector<8xf32>
    %24 = vector.shape_cast %23 : vector<8xf32> to vector<8x1xf32>
    %25 = tpu.reciprocal %24 {approx = true} : vector<8x1xf32> -> vector<8x1xf32>
    %26 = vector.broadcast %25 : vector<8x1xf32> to vector<8x8xf32>
    %27 = arith.mulf %22, %26 : vector<8x8xf32>
    %28 = arith.truncf %27 : vector<8x8xf32> to vector<8x8xbf16>
    %29 = arith.truncf %13 : vector<8x8xf32> to vector<8x8xbf16>
    %cst_19 = arith.constant dense<0.000000e+00> : vector<8x8xf32>
    %30 = tpu.matmul %28, %29, %cst_19 {dimension_numbers = #tpu.dot_dimension_numbers<[1], [0], [0], [1], [0, 0, 1, 1], [], []>} : vector<8x8xbf16>, vector<8x8xbf16>, vector<8x8xf32> -> vector<8x8xf32>
    %31 = arith.truncf %30 : vector<8x8xf32> to vector<8x8xbf16>
    %c0_20 = arith.constant 0 : index
    %c0_21 = arith.constant 0 : index
    %c0_22 = arith.constant 0 : index
    %32 = vector.load %arg6[%c0_20, %c0_21, %c0_22] : memref<4x8x32xbf16, #tpu.memory_space<vmem>>, vector<1x8x32xbf16>
    %33 = vector.shape_cast %32 : vector<1x8x32xbf16> to vector<8x32xbf16>
    %cst_23 = arith.constant dense<0.000000e+00> : vector<8x32xf32>
    %34 = tpu.matmul %31, %33, %cst_23 {dimension_numbers = #tpu.dot_dimension_numbers<[1], [0], [0], [1], [0, 0, 1, 1], [], []>} : vector<8x8xbf16>, vector<8x32xbf16>, vector<8x32xf32> -> vector<8x32xf32>
    %35 = arith.addf %4, %34 : vector<8x32xf32>
    %c1 = arith.constant 1 : index
    %c0_24 = arith.constant 0 : index
    %c0_25 = arith.constant 0 : index
    %36 = vector.load %arg3[%c1, %c0_24, %c0_25] : memref<4x32x8xbf16, #tpu.memory_space<vmem>>, vector<1x32x8xbf16>
    %37 = vector.shape_cast %36 : vector<1x32x8xbf16> to vector<32x8xbf16>
    %cst_26 = arith.constant dense<0.000000e+00> : vector<8x8xf32>
    %38 = tpu.matmul %2, %37, %cst_26 {dimension_numbers = #tpu.dot_dimension_numbers<[1], [0], [0], [1], [0, 0, 1, 1], [], []>} : vector<8x32xbf16>, vector<32x8xbf16>, vector<8x8xf32> -> vector<8x8xf32>
    %c1_27 = arith.constant 1 : index
    %c0_28 = arith.constant 0 : index
    %c0_29 = arith.constant 0 : index
    %39 = vector.load %arg4[%c1_27, %c0_28, %c0_29] : memref<4x32x8xbf16, #tpu.memory_space<vmem>>, vector<1x32x8xbf16>
    %40 = vector.shape_cast %39 : vector<1x32x8xbf16> to vector<32x8xbf16>
    %cst_30 = arith.constant dense<0.000000e+00> : vector<8x8xf32>
    %41 = tpu.matmul %2, %40, %cst_30 {dimension_numbers = #tpu.dot_dimension_numbers<[1], [0], [0], [1], [0, 0, 1, 1], [], []>} : vector<8x32xbf16>, vector<32x8xbf16>, vector<8x8xf32> -> vector<8x8xf32>
    %c1_31 = arith.constant 1 : index
    %c0_32 = arith.constant 0 : index
    %c0_33 = arith.constant 0 : index
    %42 = vector.load %arg5[%c1_31, %c0_32, %c0_33] : memref<4x32x8xbf16, #tpu.memory_space<vmem>>, vector<1x32x8xbf16>
    %43 = vector.shape_cast %42 : vector<1x32x8xbf16> to vector<32x8xbf16>
    %cst_34 = arith.constant dense<0.000000e+00> : vector<8x8xf32>
    %44 = tpu.matmul %2, %43, %cst_34 {dimension_numbers = #tpu.dot_dimension_numbers<[1], [0], [0], [1], [0, 0, 1, 1], [], []>} : vector<8x32xbf16>, vector<32x8xbf16>, vector<8x8xf32> -> vector<8x8xf32>
    %45 = arith.truncf %38 : vector<8x8xf32> to vector<8x8xbf16>
    %46 = arith.truncf %41 : vector<8x8xf32> to vector<8x8xbf16>
    "tpu.trace_start"() <{level = 10 : i32, message = "qd,kd->qk"}> : () -> ()
    %cst_35 = arith.constant dense<0.000000e+00> : vector<8x8xf32>
    %47 = tpu.matmul %45, %46, %cst_35 {dimension_numbers = #tpu.dot_dimension_numbers<[1], [1], [0], [0], [0, 0, 1, 0], [], []>} : vector<8x8xbf16>, vector<8x8xbf16>, vector<8x8xf32> -> vector<8x8xf32>
    "tpu.trace_stop"() : () -> ()
    %48 = arith.addf %47, %3 : vector<8x8xf32>
    %cst_36 = arith.constant dense<0xFF800000> : vector<8xf32>
    %49 = vector.multi_reduction <maximumf>, %48, %cst_36 [1] : vector<8x8xf32> to vector<8xf32>
    %50 = vector.shape_cast %49 : vector<8xf32> to vector<8x1xf32>
    %51 = vector.broadcast %50 : vector<8x1xf32> to vector<8x8xf32>
    %52 = arith.subf %48, %51 : vector<8x8xf32>
    %53 = math.exp %52 : vector<8x8xf32>
    %cst_37 = arith.constant dense<0.000000e+00> : vector<8xf32>
    %54 = vector.multi_reduction <add>, %53, %cst_37 [1] : vector<8x8xf32> to vector<8xf32>
    %55 = vector.shape_cast %54 : vector<8xf32> to vector<8x1xf32>
    %56 = tpu.reciprocal %55 {approx = true} : vector<8x1xf32> -> vector<8x1xf32>
    %57 = vector.broadcast %56 : vector<8x1xf32> to vector<8x8xf32>
    %58 = arith.mulf %53, %57 : vector<8x8xf32>
    %59 = arith.truncf %58 : vector<8x8xf32> to vector<8x8xbf16>
    %60 = arith.truncf %44 : vector<8x8xf32> to vector<8x8xbf16>
    %cst_38 = arith.constant dense<0.000000e+00> : vector<8x8xf32>
    %61 = tpu.matmul %59, %60, %cst_38 {dimension_numbers = #tpu.dot_dimension_numbers<[1], [0], [0], [1], [0, 0, 1, 1], [], []>} : vector<8x8xbf16>, vector<8x8xbf16>, vector<8x8xf32> -> vector<8x8xf32>
    %62 = arith.truncf %61 : vector<8x8xf32> to vector<8x8xbf16>
    %c1_39 = arith.constant 1 : index
    %c0_40 = arith.constant 0 : index
    %c0_41 = arith.constant 0 : index
    %63 = vector.load %arg6[%c1_39, %c0_40, %c0_41] : memref<4x8x32xbf16, #tpu.memory_space<vmem>>, vector<1x8x32xbf16>
    %64 = vector.shape_cast %63 : vector<1x8x32xbf16> to vector<8x32xbf16>
    %cst_42 = arith.constant dense<0.000000e+00> : vector<8x32xf32>
    %65 = tpu.matmul %62, %64, %cst_42 {dimension_numbers = #tpu.dot_dimension_numbers<[1], [0], [0], [1], [0, 0, 1, 1], [], []>} : vector<8x8xbf16>, vector<8x32xbf16>, vector<8x32xf32> -> vector<8x32xf32>
    %66 = arith.addf %35, %65 : vector<8x32xf32>
    %c2 = arith.constant 2 : index
    %c0_43 = arith.constant 0 : index
    %c0_44 = arith.constant 0 : index
    %67 = vector.load %arg3[%c2, %c0_43, %c0_44] : memref<4x32x8xbf16, #tpu.memory_space<vmem>>, vector<1x32x8xbf16>
    %68 = vector.shape_cast %67 : vector<1x32x8xbf16> to vector<32x8xbf16>
    %cst_45 = arith.constant dense<0.000000e+00> : vector<8x8xf32>
    %69 = tpu.matmul %2, %68, %cst_45 {dimension_numbers = #tpu.dot_dimension_numbers<[1], [0], [0], [1], [0, 0, 1, 1], [], []>} : vector<8x32xbf16>, vector<32x8xbf16>, vector<8x8xf32> -> vector<8x8xf32>
    %c2_46 = arith.constant 2 : index
    %c0_47 = arith.constant 0 : index
    %c0_48 = arith.constant 0 : index
    %70 = vector.load %arg4[%c2_46, %c0_47, %c0_48] : memref<4x32x8xbf16, #tpu.memory_space<vmem>>, vector<1x32x8xbf16>
    %71 = vector.shape_cast %70 : vector<1x32x8xbf16> to vector<32x8xbf16>
    %cst_49 = arith.constant dense<0.000000e+00> : vector<8x8xf32>
    %72 = tpu.matmul %2, %71, %cst_49 {dimension_numbers = #tpu.dot_dimension_numbers<[1], [0], [0], [1], [0, 0, 1, 1], [], []>} : vector<8x32xbf16>, vector<32x8xbf16>, vector<8x8xf32> -> vector<8x8xf32>
    %c2_50 = arith.constant 2 : index
    %c0_51 = arith.constant 0 : index
    %c0_52 = arith.constant 0 : index
    %73 = vector.load %arg5[%c2_50, %c0_51, %c0_52] : memref<4x32x8xbf16, #tpu.memory_space<vmem>>, vector<1x32x8xbf16>
    %74 = vector.shape_cast %73 : vector<1x32x8xbf16> to vector<32x8xbf16>
    %cst_53 = arith.constant dense<0.000000e+00> : vector<8x8xf32>
    %75 = tpu.matmul %2, %74, %cst_53 {dimension_numbers = #tpu.dot_dimension_numbers<[1], [0], [0], [1], [0, 0, 1, 1], [], []>} : vector<8x32xbf16>, vector<32x8xbf16>, vector<8x8xf32> -> vector<8x8xf32>
    %76 = arith.truncf %69 : vector<8x8xf32> to vector<8x8xbf16>
    %77 = arith.truncf %72 : vector<8x8xf32> to vector<8x8xbf16>
    "tpu.trace_start"() <{level = 10 : i32, message = "qd,kd->qk"}> : () -> ()
    %cst_54 = arith.constant dense<0.000000e+00> : vector<8x8xf32>
    %78 = tpu.matmul %76, %77, %cst_54 {dimension_numbers = #tpu.dot_dimension_numbers<[1], [1], [0], [0], [0, 0, 1, 0], [], []>} : vector<8x8xbf16>, vector<8x8xbf16>, vector<8x8xf32> -> vector<8x8xf32>
    "tpu.trace_stop"() : () -> ()
    %79 = arith.addf %78, %3 : vector<8x8xf32>
    %cst_55 = arith.constant dense<0xFF800000> : vector<8xf32>
    %80 = vector.multi_reduction <maximumf>, %79, %cst_55 [1] : vector<8x8xf32> to vector<8xf32>
    %81 = vector.shape_cast %80 : vector<8xf32> to vector<8x1xf32>
    %82 = vector.broadcast %81 : vector<8x1xf32> to vector<8x8xf32>
    %83 = arith.subf %79, %82 : vector<8x8xf32>
    %84 = math.exp %83 : vector<8x8xf32>
    %cst_56 = arith.constant dense<0.000000e+00> : vector<8xf32>
    %85 = vector.multi_reduction <add>, %84, %cst_56 [1] : vector<8x8xf32> to vector<8xf32>
    %86 = vector.shape_cast %85 : vector<8xf32> to vector<8x1xf32>
    %87 = tpu.reciprocal %86 {approx = true} : vector<8x1xf32> -> vector<8x1xf32>
    %88 = vector.broadcast %87 : vector<8x1xf32> to vector<8x8xf32>
    %89 = arith.mulf %84, %88 : vector<8x8xf32>
    %90 = arith.truncf %89 : vector<8x8xf32> to vector<8x8xbf16>
    %91 = arith.truncf %75 : vector<8x8xf32> to vector<8x8xbf16>
    %cst_57 = arith.constant dense<0.000000e+00> : vector<8x8xf32>
    %92 = tpu.matmul %90, %91, %cst_57 {dimension_numbers = #tpu.dot_dimension_numbers<[1], [0], [0], [1], [0, 0, 1, 1], [], []>} : vector<8x8xbf16>, vector<8x8xbf16>, vector<8x8xf32> -> vector<8x8xf32>
    %93 = arith.truncf %92 : vector<8x8xf32> to vector<8x8xbf16>
    %c2_58 = arith.constant 2 : index
    %c0_59 = arith.constant 0 : index
    %c0_60 = arith.constant 0 : index
    %94 = vector.load %arg6[%c2_58, %c0_59, %c0_60] : memref<4x8x32xbf16, #tpu.memory_space<vmem>>, vector<1x8x32xbf16>
    %95 = vector.shape_cast %94 : vector<1x8x32xbf16> to vector<8x32xbf16>
    %cst_61 = arith.constant dense<0.000000e+00> : vector<8x32xf32>
    %96 = tpu.matmul %93, %95, %cst_61 {dimension_numbers = #tpu.dot_dimension_numbers<[1], [0], [0], [1], [0, 0, 1, 1], [], []>} : vector<8x8xbf16>, vector<8x32xbf16>, vector<8x32xf32> -> vector<8x32xf32>
    %97 = arith.addf %66, %96 : vector<8x32xf32>
    %c3 = arith.constant 3 : index
    %c0_62 = arith.constant 0 : index
    %c0_63 = arith.constant 0 : index
    %98 = vector.load %arg3[%c3, %c0_62, %c0_63] : memref<4x32x8xbf16, #tpu.memory_space<vmem>>, vector<1x32x8xbf16>
    %99 = vector.shape_cast %98 : vector<1x32x8xbf16> to vector<32x8xbf16>
    %cst_64 = arith.constant dense<0.000000e+00> : vector<8x8xf32>
    %100 = tpu.matmul %2, %99, %cst_64 {dimension_numbers = #tpu.dot_dimension_numbers<[1], [0], [0], [1], [0, 0, 1, 1], [], []>} : vector<8x32xbf16>, vector<32x8xbf16>, vector<8x8xf32> -> vector<8x8xf32>
    %c3_65 = arith.constant 3 : index
    %c0_66 = arith.constant 0 : index
    %c0_67 = arith.constant 0 : index
    %101 = vector.load %arg4[%c3_65, %c0_66, %c0_67] : memref<4x32x8xbf16, #tpu.memory_space<vmem>>, vector<1x32x8xbf16>
    %102 = vector.shape_cast %101 : vector<1x32x8xbf16> to vector<32x8xbf16>
    %cst_68 = arith.constant dense<0.000000e+00> : vector<8x8xf32>
    %103 = tpu.matmul %2, %102, %cst_68 {dimension_numbers = #tpu.dot_dimension_numbers<[1], [0], [0], [1], [0, 0, 1, 1], [], []>} : vector<8x32xbf16>, vector<32x8xbf16>, vector<8x8xf32> -> vector<8x8xf32>
    %c3_69 = arith.constant 3 : index
    %c0_70 = arith.constant 0 : index
    %c0_71 = arith.constant 0 : index
    %104 = vector.load %arg5[%c3_69, %c0_70, %c0_71] : memref<4x32x8xbf16, #tpu.memory_space<vmem>>, vector<1x32x8xbf16>
    %105 = vector.shape_cast %104 : vector<1x32x8xbf16> to vector<32x8xbf16>
    %cst_72 = arith.constant dense<0.000000e+00> : vector<8x8xf32>
    %106 = tpu.matmul %2, %105, %cst_72 {dimension_numbers = #tpu.dot_dimension_numbers<[1], [0], [0], [1], [0, 0, 1, 1], [], []>} : vector<8x32xbf16>, vector<32x8xbf16>, vector<8x8xf32> -> vector<8x8xf32>
    %107 = arith.truncf %100 : vector<8x8xf32> to vector<8x8xbf16>
    %108 = arith.truncf %103 : vector<8x8xf32> to vector<8x8xbf16>
    "tpu.trace_start"() <{level = 10 : i32, message = "qd,kd->qk"}> : () -> ()
    %cst_73 = arith.constant dense<0.000000e+00> : vector<8x8xf32>
    %109 = tpu.matmul %107, %108, %cst_73 {dimension_numbers = #tpu.dot_dimension_numbers<[1], [1], [0], [0], [0, 0, 1, 0], [], []>} : vector<8x8xbf16>, vector<8x8xbf16>, vector<8x8xf32> -> vector<8x8xf32>
    "tpu.trace_stop"() : () -> ()
    %110 = arith.addf %109, %3 : vector<8x8xf32>
    %cst_74 = arith.constant dense<0xFF800000> : vector<8xf32>
    %111 = vector.multi_reduction <maximumf>, %110, %cst_74 [1] : vector<8x8xf32> to vector<8xf32>
    %112 = vector.shape_cast %111 : vector<8xf32> to vector<8x1xf32>
    %113 = vector.broadcast %112 : vector<8x1xf32> to vector<8x8xf32>
    %114 = arith.subf %110, %113 : vector<8x8xf32>
    %115 = math.exp %114 : vector<8x8xf32>
    %cst_75 = arith.constant dense<0.000000e+00> : vector<8xf32>
    %116 = vector.multi_reduction <add>, %115, %cst_75 [1] : vector<8x8xf32> to vector<8xf32>
    %117 = vector.shape_cast %116 : vector<8xf32> to vector<8x1xf32>
    %118 = tpu.reciprocal %117 {approx = true} : vector<8x1xf32> -> vector<8x1xf32>
    %119 = vector.broadcast %118 : vector<8x1xf32> to vector<8x8xf32>
    %120 = arith.mulf %115, %119 : vector<8x8xf32>
    %121 = arith.truncf %120 : vector<8x8xf32> to vector<8x8xbf16>
    %122 = arith.truncf %106 : vector<8x8xf32> to vector<8x8xbf16>
    %cst_76 = arith.constant dense<0.000000e+00> : vector<8x8xf32>
    %123 = tpu.matmul %121, %122, %cst_76 {dimension_numbers = #tpu.dot_dimension_numbers<[1], [0], [0], [1], [0, 0, 1, 1], [], []>} : vector<8x8xbf16>, vector<8x8xbf16>, vector<8x8xf32> -> vector<8x8xf32>
    %124 = arith.truncf %123 : vector<8x8xf32> to vector<8x8xbf16>
    %c3_77 = arith.constant 3 : index
    %c0_78 = arith.constant 0 : index
    %c0_79 = arith.constant 0 : index
    %125 = vector.load %arg6[%c3_77, %c0_78, %c0_79] : memref<4x8x32xbf16, #tpu.memory_space<vmem>>, vector<1x8x32xbf16>
    %126 = vector.shape_cast %125 : vector<1x8x32xbf16> to vector<8x32xbf16>
    %cst_80 = arith.constant dense<0.000000e+00> : vector<8x32xf32>
    %127 = tpu.matmul %124, %126, %cst_80 {dimension_numbers = #tpu.dot_dimension_numbers<[1], [0], [0], [1], [0, 0, 1, 1], [], []>} : vector<8x8xbf16>, vector<8x32xbf16>, vector<8x32xf32> -> vector<8x32xf32>
    %128 = arith.addf %97, %127 : vector<8x32xf32>
    %129 = arith.addf %1, %128 : vector<8x32xf32>
    %c0_81 = arith.constant 0 : index
    %c0_82 = arith.constant 0 : index
    %130 = vector.load %arg11[%c0_81, %c0_82] : memref<2x32xf32, #tpu.memory_space<vmem>>, vector<1x32xf32>
    %c0_83 = arith.constant 0 : index
    %c0_84 = arith.constant 0 : index
    %131 = vector.load %arg12[%c0_83, %c0_84] : memref<2x32xf32, #tpu.memory_space<vmem>>, vector<1x32xf32>
    %cst_85 = arith.constant dense<0.000000e+00> : vector<8xf32>
    %132 = vector.multi_reduction <add>, %129, %cst_85 [1] : vector<8x32xf32> to vector<8xf32>
    %133 = vector.shape_cast %132 : vector<8xf32> to vector<8x1xf32>
    %cst_86 = arith.constant 3.200000e+01 : f32
    %134 = vector.broadcast %cst_86 : f32 to vector<8x1xf32>
    %135 = arith.divf %133, %134 : vector<8x1xf32>
    %136 = vector.broadcast %135 : vector<8x1xf32> to vector<8x32xf32>
    %137 = arith.subf %129, %136 : vector<8x32xf32>
    %138 = arith.mulf %137, %137 : vector<8x32xf32>
    %cst_87 = arith.constant dense<0.000000e+00> : vector<8xf32>
    %139 = vector.multi_reduction <add>, %138, %cst_87 [1] : vector<8x32xf32> to vector<8xf32>
    %140 = vector.shape_cast %139 : vector<8xf32> to vector<8x1xf32>
    %cst_88 = arith.constant 0.0322580636 : f32
    %141 = vector.broadcast %cst_88 : f32 to vector<8x1xf32>
    %142 = arith.mulf %140, %141 : vector<8x1xf32>
    %143 = vector.broadcast %130 : vector<1x32xf32> to vector<8x32xf32>
    %144 = arith.mulf %143, %137 : vector<8x32xf32>
    %145 = math.sqrt %142 : vector<8x1xf32>
    %cst_89 = arith.constant 9.99999997E-7 : f32
    %146 = vector.broadcast %cst_89 : f32 to vector<8x1xf32>
    %147 = arith.addf %145, %146 : vector<8x1xf32>
    %148 = vector.broadcast %147 : vector<8x1xf32> to vector<8x32xf32>
    %149 = arith.divf %144, %148 : vector<8x32xf32>
    %150 = vector.broadcast %131 : vector<1x32xf32> to vector<8x32xf32>
    %151 = arith.addf %149, %150 : vector<8x32xf32>
    %152 = arith.truncf %151 : vector<8x32xf32> to vector<8x32xbf16>
    %c0_90 = arith.constant 0 : index
    %c0_91 = arith.constant 0 : index
    %153 = vector.load %arg7[%c0_90, %c0_91] : memref<32x64xbf16, #tpu.memory_space<vmem>>, vector<32x64xbf16>
    %cst_92 = arith.constant dense<0.000000e+00> : vector<8x64xf32>
    %154 = tpu.matmul %152, %153, %cst_92 {dimension_numbers = #tpu.dot_dimension_numbers<[1], [0], [0], [1], [0, 0, 1, 1], [], []>} : vector<8x32xbf16>, vector<32x64xbf16>, vector<8x64xf32> -> vector<8x64xf32>
    %c0_93 = arith.constant 0 : index
    %c0_94 = arith.constant 0 : index
    %155 = vector.load %arg8[%c0_93, %c0_94] : memref<1x64xf32, #tpu.memory_space<vmem>>, vector<1x64xf32>
    %156 = vector.broadcast %155 : vector<1x64xf32> to vector<8x64xf32>
    %157 = arith.addf %154, %156 : vector<8x64xf32>
    %cst_95 = arith.constant 0.000000e+00 : f32
    %158 = vector.broadcast %cst_95 : f32 to vector<8x64xf32>
    %159 = arith.maximumf %157, %158 : vector<8x64xf32>
    %160 = arith.truncf %159 : vector<8x64xf32> to vector<8x64xbf16>
    %c0_96 = arith.constant 0 : index
    %c0_97 = arith.constant 0 : index
    %161 = vector.load %arg9[%c0_96, %c0_97] : memref<64x32xbf16, #tpu.memory_space<vmem>>, vector<64x32xbf16>
    %cst_98 = arith.constant dense<0.000000e+00> : vector<8x32xf32>
    %162 = tpu.matmul %160, %161, %cst_98 {dimension_numbers = #tpu.dot_dimension_numbers<[1], [0], [0], [1], [0, 0, 1, 1], [], []>} : vector<8x64xbf16>, vector<64x32xbf16>, vector<8x32xf32> -> vector<8x32xf32>
    %c0_99 = arith.constant 0 : index
    %c0_100 = arith.constant 0 : index
    %163 = vector.load %arg10[%c0_99, %c0_100] : memref<1x32xf32, #tpu.memory_space<vmem>>, vector<1x32xf32>
    %164 = vector.broadcast %163 : vector<1x32xf32> to vector<8x32xf32>
    %165 = arith.addf %162, %164 : vector<8x32xf32>
    %166 = arith.addf %151, %165 : vector<8x32xf32>
    %c1_101 = arith.constant 1 : index
    %c0_102 = arith.constant 0 : index
    %167 = vector.load %arg11[%c1_101, %c0_102] : memref<2x32xf32, #tpu.memory_space<vmem>>, vector<1x32xf32>
    %c1_103 = arith.constant 1 : index
    %c0_104 = arith.constant 0 : index
    %168 = vector.load %arg12[%c1_103, %c0_104] : memref<2x32xf32, #tpu.memory_space<vmem>>, vector<1x32xf32>
    %cst_105 = arith.constant dense<0.000000e+00> : vector<8xf32>
    %169 = vector.multi_reduction <add>, %166, %cst_105 [1] : vector<8x32xf32> to vector<8xf32>
    %170 = vector.shape_cast %169 : vector<8xf32> to vector<8x1xf32>
    %cst_106 = arith.constant 3.200000e+01 : f32
    %171 = vector.broadcast %cst_106 : f32 to vector<8x1xf32>
    %172 = arith.divf %170, %171 : vector<8x1xf32>
    %173 = vector.broadcast %172 : vector<8x1xf32> to vector<8x32xf32>
    %174 = arith.subf %166, %173 : vector<8x32xf32>
    %175 = arith.mulf %174, %174 : vector<8x32xf32>
    %cst_107 = arith.constant dense<0.000000e+00> : vector<8xf32>
    %176 = vector.multi_reduction <add>, %175, %cst_107 [1] : vector<8x32xf32> to vector<8xf32>
    %177 = vector.shape_cast %176 : vector<8xf32> to vector<8x1xf32>
    %cst_108 = arith.constant 0.0322580636 : f32
    %178 = vector.broadcast %cst_108 : f32 to vector<8x1xf32>
    %179 = arith.mulf %177, %178 : vector<8x1xf32>
    %180 = vector.broadcast %167 : vector<1x32xf32> to vector<8x32xf32>
    %181 = arith.mulf %180, %174 : vector<8x32xf32>
    %182 = math.sqrt %179 : vector<8x1xf32>
    %cst_109 = arith.constant 9.99999997E-7 : f32
    %183 = vector.broadcast %cst_109 : f32 to vector<8x1xf32>
    %184 = arith.addf %182, %183 : vector<8x1xf32>
    %185 = vector.broadcast %184 : vector<8x1xf32> to vector<8x32xf32>
    %186 = arith.divf %181, %185 : vector<8x32xf32>
    %187 = vector.broadcast %168 : vector<1x32xf32> to vector<8x32xf32>
    %188 = arith.addf %186, %187 : vector<8x32xf32>
    %c0_110 = arith.constant 0 : index
    %c0_111 = arith.constant 0 : index
    %c0_112 = arith.constant 0 : index
    %189 = vector.load %arg13[%c0_110, %c0_111, %c0_112] : memref<1x8x32xf32, #tpu.memory_space<vmem>>, vector<1x8x32xf32>
    %190 = vector.shape_cast %189 : vector<1x8x32xf32> to vector<8x32xf32>
    %191 = vector.shape_cast %188 : vector<8x32xf32> to vector<1x8x32xf32>
    tpu.vector_store %arg13[%c0_110, %c0_111, %c0_112], %191 {strides = array<i32>} : memref<1x8x32xf32, #tpu.memory_space<vmem>>, vector<1x8x32xf32>,
    return
  }
  func.func @transform_0(%arg0: i32) -> (i32, i32, i32) {
    %c0_i32 = arith.constant 0 : i32
    %c0_i32_0 = arith.constant 0 : i32
    %c0_i32_1 = arith.constant 0 : i32
    return %arg0, %c0_i32, %c0_i32_0 : i32, i32, i32
  }
  func.func @transform_1(%arg0: i32) -> (i32, i32) {
    %c0_i32 = arith.constant 0 : i32
    %c0_i32_0 = arith.constant 0 : i32
    %c0_i32_1 = arith.constant 0 : i32
    return %c0_i32, %c0_i32_0 : i32, i32
  }
  func.func @transform_2(%arg0: i32) -> (i32, i32, i32) {
    %c0_i32 = arith.constant 0 : i32
    %c0_i32_0 = arith.constant 0 : i32
    %c0_i32_1 = arith.constant 0 : i32
    %c0_i32_2 = arith.constant 0 : i32
    return %c0_i32, %c0_i32_0, %c0_i32_1 : i32, i32, i32
  }
  func.func @transform_3(%arg0: i32) -> (i32, i32, i32) {
    %c0_i32 = arith.constant 0 : i32
    %c0_i32_0 = arith.constant 0 : i32
    %c0_i32_1 = arith.constant 0 : i32
    %c0_i32_2 = arith.constant 0 : i32
    return %c0_i32, %c0_i32_0, %c0_i32_1 : i32, i32, i32
  }
  func.func @transform_4(%arg0: i32) -> (i32, i32, i32) {
    %c0_i32 = arith.constant 0 : i32
    %c0_i32_0 = arith.constant 0 : i32
    %c0_i32_1 = arith.constant 0 : i32
    %c0_i32_2 = arith.constant 0 : i32
    return %c0_i32, %c0_i32_0, %c0_i32_1 : i32, i32, i32
  }
  func.func @transform_5(%arg0: i32) -> (i32, i32, i32) {
    %c0_i32 = arith.constant 0 : i32
    %c0_i32_0 = arith.constant 0 : i32
    %c0_i32_1 = arith.constant 0 : i32
    %c0_i32_2 = arith.constant 0 : i32
    return %c0_i32, %c0_i32_0, %c0_i32_1 : i32, i32, i32
  }
  func.func @transform_6(%arg0: i32) -> (i32, i32) {
    %c0_i32 = arith.constant 0 : i32
    %c0_i32_0 = arith.constant 0 : i32
    %c0_i32_1 = arith.constant 0 : i32
    return %c0_i32, %c0_i32_0 : i32, i32
  }
  func.func @transform_7(%arg0: i32) -> (i32, i32) {
    %c0_i32 = arith.constant 0 : i32
    %c0_i32_0 = arith.constant 0 : i32
    %c0_i32_1 = arith.constant 0 : i32
    return %c0_i32, %c0_i32_0 : i32, i32
  }
  func.func @transform_8(%arg0: i32) -> (i32, i32) {
    %c0_i32 = arith.constant 0 : i32
    %c0_i32_0 = arith.constant 0 : i32
    %c0_i32_1 = arith.constant 0 : i32
    return %c0_i32, %c0_i32_0 : i32, i32
  }
  func.func @transform_9(%arg0: i32) -> (i32, i32) {
    %c0_i32 = arith.constant 0 : i32
    %c0_i32_0 = arith.constant 0 : i32
    %c0_i32_1 = arith.constant 0 : i32
    return %c0_i32, %c0_i32_0 : i32, i32
  }
  func.func @transform_10(%arg0: i32) -> (i32, i32) {
    %c0_i32 = arith.constant 0 : i32
    %c0_i32_0 = arith.constant 0 : i32
    %c0_i32_1 = arith.constant 0 : i32
    return %c0_i32, %c0_i32_0 : i32, i32
  }
  func.func @transform_11(%arg0: i32) -> (i32, i32) {
    %c0_i32 = arith.constant 0 : i32
    %c0_i32_0 = arith.constant 0 : i32
    %c0_i32_1 = arith.constant 0 : i32
    return %c0_i32, %c0_i32_0 : i32, i32
  }
  func.func @transform_12(%arg0: i32) -> (i32, i32, i32) {
    %c0_i32 = arith.constant 0 : i32
    %c0_i32_0 = arith.constant 0 : i32
    %c0_i32_1 = arith.constant 0 : i32
    return %arg0, %c0_i32, %c0_i32_0 : i32, i32, i32
  }
}

</mosaic_0001>

<llo_original>
// kernel: tpu_custom_call.1
$region0: #{tpu_custom_call.1}
  #allocation0 [shape = 'u32[]', space=smem, size = 0x4, offset = 0x4, fixed_abs, tag = 'smem constant byte address 0x4 - core index']
  #allocation1 [shape = 'u32[144,128]{1,0:T(1,128)}', space=vmem, size = 0x12000, scoped, tag = 'internal scratch']
  %s0 = inlined_call_operand.vmem [shape: f32[2,8,32], index: 0, kind: input, shape index: {}]
  %s1 = inlined_call_operand.vmem [shape: f32[8,8], index: 1, kind: input, shape index: {}]
  %s2 = inlined_call_operand.vmem [shape: bf16[4,32,8], index: 2, kind: input, shape index: {}]
  %s3 = inlined_call_operand.vmem [shape: bf16[4,32,8], index: 3, kind: input, shape index: {}]
  %s4 = inlined_call_operand.vmem [shape: bf16[4,32,8], index: 4, kind: input, shape index: {}]
  %s5 = inlined_call_operand.vmem [shape: bf16[4,8,32], index: 5, kind: input, shape index: {}]
  %s6 = inlined_call_operand.vmem [shape: bf16[32,64], index: 6, kind: input, shape index: {}]
  %s7 = inlined_call_operand.vmem [shape: f32[1,64], index: 7, kind: input, shape index: {}]
  %s8 = inlined_call_operand.vmem [shape: bf16[64,32], index: 8, kind: input, shape index: {}]
  %s9 = inlined_call_operand.vmem [shape: f32[1,32], index: 9, kind: input, shape index: {}]
  %s10 = inlined_call_operand.vmem [shape: f32[2,32], index: 10, kind: input, shape index: {}]
  %s11 = inlined_call_operand.vmem [shape: f32[2,32], index: 11, kind: input, shape index: {}]
  %s12 = inlined_call_operand.hbm [shape: f32[2,8,32], index: 12, kind: output, shape index: {}]
  %s13 = sld [smem:[#allocation0]]
  $region81: #{tpu_custom_call.1} parent=0
    _
  %s15 = ssub.s32 1, %s13
  %s16 = scalar_select 0, %s15, %s13
  $region1: #{tpu_custom_call.1} parent=0
    #allocation2 [shape = 'u8[8192]{0}', space=vmem, size = 0x2000, scoped, tag = 'output window, operand 0']
    #allocation3 [shape = 's32[2]{0}', space=sflag, size = 0x8, scoped, tag = 'scoped memory for tpu_custom_call.1']
    %17 = vsyncpa [#allocation3], 0
    %s18 = scalar_lea.sflag [#allocation3], 1
    %19 = vsyncpa %s18, 0
    loop: start=0, step=1, limit=4
    $region2: #{tpu_custom_call.1} parent=1 // loop_pre_header
      _
    $region3: #{tpu_custom_call.1} parent=1 // loop_header
      %s21 = sphi 0, %s25
      %p22 = scmp.ge.s32.totalorder %s21, 4
      %s31 = sphi 0, %s33
      %s34 = sphi 0, %s31
      %s35 = sphi 0, %s34
      %s51 = sphi 0, %s35
      %s55 = sphi 0, %s55
      %s57 = sphi 0, %s55
      %s58 = sphi 0, %s57
      %s72 = sphi 0, %s58
      %s76 = sphi 0, %s76
      %s78 = sphi 0, %s76
      %s79 = sphi 0, %s78
      %s93 = sphi 0, %s79
      %s97 = sphi 0, %s97
      %s99 = sphi 0, %s97
      %s100 = sphi 0, %s99
      %s114 = sphi 0, %s100
      %s118 = sphi 0, %s118
      %s120 = sphi 0, %s118
      %s121 = sphi 0, %s120
      %s135 = sphi 0, %s121
      %s139 = sphi 0, %s139
      %s141 = sphi 0, %s139
      %s142 = sphi 0, %s141
      %s156 = sphi 0, %s142
      %s160 = sphi 0, %s160
      %s162 = sphi 0, %s160
      %s163 = sphi 0, %s162
      %s177 = sphi 0, %s163
      %s181 = sphi 0, %s181
      %s183 = sphi 0, %s181
      %s184 = sphi 0, %s183
      %s198 = sphi 0, %s184
      %s202 = sphi 0, %s202
      %s204 = sphi 0, %s202
      %s205 = sphi 0, %s204
      %s219 = sphi 0, %s205
      %s223 = sphi 0, %s223
      %s225 = sphi 0, %s223
      %s226 = sphi 0, %s225
      %s240 = sphi 0, %s226
      %s244 = sphi 0, %s244
      %s246 = sphi 0, %s244
      %s247 = sphi 0, %s246
      %s261 = sphi 0, %s247
      %s265 = sphi 0, %s265
      %s267 = sphi 0, %s265
      %s268 = sphi 0, %s267
      %s282 = sphi 0, %s268
      %s288 = sphi 0, %s290
      %s291 = sphi 0, %s288
      %s292 = sphi 0, %s291
      %s308 = sphi 0, %s292
    $region4: #{tpu_custom_call.1} parent=1 // loop_header_branch
      %24 = sbr.rel (%p22) target = $region8
    $region5: #{tpu_custom_call.1} parent=1 // loop_body
      %s26 = ssub.s32 %s21, 1
      %s27 = ssub.s32 %s21, 2
      %s28 = sadd.s32 %s21, 1
      %s29 = ssub.s32 %s21, %s28
      %p30 = scmp.eq.s32.totalorder %s29, 0
      %s32 = sadd.s32 %s31, 1
      %s33 = scalar_select %p30, %s31, %s32
      %p36 = pneg %p30
      %p37 = scmp.eq.s32.totalorder %s21, 1
      %p38 = por %p36, %p37
      %p39 = scmp.ne.s32.totalorder %s31, %s34
      %p40 = scmp.eq.s32.totalorder %s21, 0
      %p41 = por %p39, %p40
      %p42 = scmp.ne.s32.totalorder %s31, %s34
      %p43 = scmp.eq.s32.totalorder %s26, 1
      %p44 = por %p42, %p43
      %p45 = scmp.ne.s32.totalorder %s34, %s35
      %p46 = scmp.eq.s32.totalorder %s26, 0
      %p47 = por %p45, %p46
      %p48 = scmp.ne.s32.totalorder %s34, %s35
      %p49 = scmp.eq.s32.totalorder %s27, 1
      %p50 = por %p48, %p49
      %p52 = scmp.ne.s32.totalorder %s35, %s51
      %p53 = scmp.eq.s32.totalorder %s27, 0
      %p54 = por %p52, %p53
      %s56 = sadd.s32 %s55, 1
      %p59 = scmp.eq.s32.totalorder %s21, 1
      %p60 = scmp.ne.s32.totalorder %s55, %s57
      %p61 = scmp.eq.s32.totalorder %s21, 0
      %p62 = por %p60, %p61
      %p63 = scmp.ne.s32.totalorder %s55, %s57
      %p64 = scmp.eq.s32.totalorder %s26, 1
      %p65 = por %p63, %p64
      %p66 = scmp.ne.s32.totalorder %s57, %s58
      %p67 = scmp.eq.s32.totalorder %s26, 0
      %p68 = por %p66, %p67
      %p69 = scmp.ne.s32.totalorder %s57, %s58
      %p70 = scmp.eq.s32.totalorder %s27, 1
      %p71 = por %p69, %p70
      %p73 = scmp.ne.s32.totalorder %s58, %s72
      %p74 = scmp.eq.s32.totalorder %s27, 0
      %p75 = por %p73, %p74
      %s77 = sadd.s32 %s76, 1
      %p80 = scmp.eq.s32.totalorder %s21, 1
      %p81 = scmp.ne.s32.totalorder %s76, %s78
      %p82 = scmp.eq.s32.totalorder %s21, 0
      %p83 = por %p81, %p82
      %p84 = scmp.ne.s32.totalorder %s76, %s78
      %p85 = scmp.eq.s32.totalorder %s26, 1
      %p86 = por %p84, %p85
      %p87 = scmp.ne.s32.totalorder %s78, %s79
      %p88 = scmp.eq.s32.totalorder %s26, 0
      %p89 = por %p87, %p88
      %p90 = scmp.ne.s32.totalorder %s78, %s79
      %p91 = scmp.eq.s32.totalorder %s27, 1
      %p92 = por %p90, %p91
      %p94 = scmp.ne.s32.totalorder %s79, %s93
      %p95 = scmp.eq.s32.totalorder %s27, 0
      %p96 = por %p94, %p95
      %s98 = sadd.s32 %s97, 1
      %p101 = scmp.eq.s32.totalorder %s21, 1
      %p102 = scmp.ne.s32.totalorder %s97, %s99
      %p103 = scmp.eq.s32.totalorder %s21, 0
      %p104 = por %p102, %p103
      %p105 = scmp.ne.s32.totalorder %s97, %s99
      %p106 = scmp.eq.s32.totalorder %s26, 1
      %p107 = por %p105, %p106
      %p108 = scmp.ne.s32.totalorder %s99, %s100
      %p109 = scmp.eq.s32.totalorder %s26, 0
      %p110 = por %p108, %p109
      %p111 = scmp.ne.s32.totalorder %s99, %s100
      %p112 = scmp.eq.s32.totalorder %s27, 1
      %p113 = por %p111, %p112
      %p115 = scmp.ne.s32.totalorder %s100, %s114
      %p116 = scmp.eq.s32.totalorder %s27, 0
      %p117 = por %p115, %p116
      %s119 = sadd.s32 %s118, 1
      %p122 = scmp.eq.s32.totalorder %s21, 1
      %p123 = scmp.ne.s32.totalorder %s118, %s120
      %p124 = scmp.eq.s32.totalorder %s21, 0
      %p125 = por %p123, %p124
      %p126 = scmp.ne.s32.totalorder %s118, %s120
      %p127 = scmp.eq.s32.totalorder %s26, 1
      %p128 = por %p126, %p127
      %p129 = scmp.ne.s32.totalorder %s120, %s121
      %p130 = scmp.eq.s32.totalorder %s26, 0
      %p131 = por %p129, %p130
      %p132 = scmp.ne.s32.totalorder %s120, %s121
      %p133 = scmp.eq.s32.totalorder %s27, 1
      %p134 = por %p132, %p133
      %p136 = scmp.ne.s32.totalorder %s121, %s135
      %p137 = scmp.eq.s32.totalorder %s27, 0
      %p138 = por %p136, %p137
      %s140 = sadd.s32 %s139, 1
      %p143 = scmp.eq.s32.totalorder %s21, 1
      %p144 = scmp.ne.s32.totalorder %s139, %s141
      %p145 = scmp.eq.s32.totalorder %s21, 0
      %p146 = por %p144, %p145
      %p147 = scmp.ne.s32.totalorder %s139, %s141
      %p148 = scmp.eq.s32.totalorder %s26, 1
      %p149 = por %p147, %p148
      %p150 = scmp.ne.s32.totalorder %s141, %s142
      %p151 = scmp.eq.s32.totalorder %s26, 0
      %p152 = por %p150, %p151
      %p153 = scmp.ne.s32.totalorder %s141, %s142
      %p154 = scmp.eq.s32.totalorder %s27, 1
      %p155 = por %p153, %p154
      %p157 = scmp.ne.s32.totalorder %s142, %s156
      %p158 = scmp.eq.s32.totalorder %s27, 0
      %p159 = por %p157, %p158
      %s161 = sadd.s32 %s160, 1
      %p164 = scmp.eq.s32.totalorder %s21, 1
      %p165 = scmp.ne.s32.totalorder %s160, %s162
      %p166 = scmp.eq.s32.totalorder %s21, 0
      %p167 = por %p165, %p166
      %p168 = scmp.ne.s32.totalorder %s160, %s162
      %p169 = scmp.eq.s32.totalorder %s26, 1
      %p170 = por %p168, %p169
      %p171 = scmp.ne.s32.totalorder %s162, %s163
      %p172 = scmp.eq.s32.totalorder %s26, 0
      %p173 = por %p171, %p172
      %p174 = scmp.ne.s32.totalorder %s162, %s163
      %p175 = scmp.eq.s32.totalorder %s27, 1
      %p176 = por %p174, %p175
      %p178 = scmp.ne.s32.totalorder %s163, %s177
      %p179 = scmp.eq.s32.totalorder %s27, 0
      %p180 = por %p178, %p179
      %s182 = sadd.s32 %s181, 1
      %p185 = scmp.eq.s32.totalorder %s21, 1
      %p186 = scmp.ne.s32.totalorder %s181, %s183
      %p187 = scmp.eq.s32.totalorder %s21, 0
      %p188 = por %p186, %p187
      %p189 = scmp.ne.s32.totalorder %s181, %s183
      %p190 = scmp.eq.s32.totalorder %s26, 1
      %p191 = por %p189, %p190
      %p192 = scmp.ne.s32.totalorder %s183, %s184
      %p193 = scmp.eq.s32.totalorder %s26, 0
      %p194 = por %p192, %p193
      %p195 = scmp.ne.s32.totalorder %s183, %s184
      %p196 = scmp.eq.s32.totalorder %s27, 1
      %p197 = por %p195, %p196
      %p199 = scmp.ne.s32.totalorder %s184, %s198
      %p200 = scmp.eq.s32.totalorder %s27, 0
      %p201 = por %p199, %p200
      %s203 = sadd.s32 %s202, 1
      %p206 = scmp.eq.s32.totalorder %s21, 1
      %p207 = scmp.ne.s32.totalorder %s202, %s204
      %p208 = scmp.eq.s32.totalorder %s21, 0
      %p209 = por %p207, %p208
      %p210 = scmp.ne.s32.totalorder %s202, %s204
      %p211 = scmp.eq.s32.totalorder %s26, 1
      %p212 = por %p210, %p211
      %p213 = scmp.ne.s32.totalorder %s204, %s205
      %p214 = scmp.eq.s32.totalorder %s26, 0
      %p215 = por %p213, %p214
      %p216 = scmp.ne.s32.totalorder %s204, %s205
      %p217 = scmp.eq.s32.totalorder %s27, 1
      %p218 = por %p216, %p217
      %p220 = scmp.ne.s32.totalorder %s205, %s219
      %p221 = scmp.eq.s32.totalorder %s27, 0
      %p222 = por %p220, %p221
      %s224 = sadd.s32 %s223, 1
      %p227 = scmp.eq.s32.totalorder %s21, 1
      %p228 = scmp.ne.s32.totalorder %s223, %s225
      %p229 = scmp.eq.s32.totalorder %s21, 0
      %p230 = por %p228, %p229
      %p231 = scmp.ne.s32.totalorder %s223, %s225
      %p232 = scmp.eq.s32.totalorder %s26, 1
      %p233 = por %p231, %p232
      %p234 = scmp.ne.s32.totalorder %s225, %s226
      %p235 = scmp.eq.s32.totalorder %s26, 0
      %p236 = por %p234, %p235
      %p237 = scmp.ne.s32.totalorder %s225, %s226
      %p238 = scmp.eq.s32.totalorder %s27, 1
      %p239 = por %p237, %p238
      %p241 = scmp.ne.s32.totalorder %s226, %s240
      %p242 = scmp.eq.s32.totalorder %s27, 0
      %p243 = por %p241, %p242
      %s245 = sadd.s32 %s244, 1
      %p248 = scmp.eq.s32.totalorder %s21, 1
      %p249 = scmp.ne.s32.totalorder %s244, %s246
      %p250 = scmp.eq.s32.totalorder %s21, 0
      %p251 = por %p249, %p250
      %p252 = scmp.ne.s32.totalorder %s244, %s246
      %p253 = scmp.eq.s32.totalorder %s26, 1
      %p254 = por %p252, %p253
      %p255 = scmp.ne.s32.totalorder %s246, %s247
      %p256 = scmp.eq.s32.totalorder %s26, 0
      %p257 = por %p255, %p256
      %p258 = scmp.ne.s32.totalorder %s246, %s247
      %p259 = scmp.eq.s32.totalorder %s27, 1
      %p260 = por %p258, %p259
      %p262 = scmp.ne.s32.totalorder %s247, %s261
      %p263 = scmp.eq.s32.totalorder %s27, 0
      %p264 = por %p262, %p263
      %s266 = sadd.s32 %s265, 1
      %p269 = scmp.eq.s32.totalorder %s21, 1
      %p270 = scmp.ne.s32.totalorder %s265, %s267
      %p271 = scmp.eq.s32.totalorder %s21, 0
      %p272 = por %p270, %p271
      %p273 = scmp.ne.s32.totalorder %s265, %s267
      %p274 = scmp.eq.s32.totalorder %s26, 1
      %p275 = por %p273, %p274
      %p276 = scmp.ne.s32.totalorder %s267, %s268
      %p277 = scmp.eq.s32.totalorder %s26, 0
      %p278 = por %p276, %p277
      %p279 = scmp.ne.s32.totalorder %s267, %s268
      %p280 = scmp.eq.s32.totalorder %s27, 1
      %p281 = por %p279, %p280
      %p283 = scmp.ne.s32.totalorder %s268, %s282
      %p284 = scmp.eq.s32.totalorder %s27, 0
      %p285 = por %p283, %p284
      %s286 = ssub.s32 %s21, %s28
      %p287 = scmp.eq.s32.totalorder %s286, 0
      %s289 = sadd.s32 %s288, 1
      %s290 = scalar_select %p287, %s288, %s289
      %p293 = pneg %p287
      %p294 = scmp.eq.s32.totalorder %s21, 1
      %p295 = por %p293, %p294
      %p296 = scmp.ne.s32.totalorder %s288, %s291
      %p297 = scmp.eq.s32.totalorder %s21, 0
      %p298 = por %p296, %p297
      %p299 = scmp.ne.s32.totalorder %s288, %s291
      %p300 = scmp.eq.s32.totalorder %s26, 1
      %p301 = por %p299, %p300
      %p302 = scmp.ne.s32.totalorder %s291, %s292
      %p303 = scmp.eq.s32.totalorder %s26, 0
      %p304 = por %p302, %p303
      %p305 = scmp.ne.s32.totalorder %s291, %s292
      %p306 = scmp.eq.s32.totalorder %s27, 1
      %p307 = por %p305, %p306
      %p309 = scmp.ne.s32.totalorder %s292, %s308
      %p310 = scmp.eq.s32.totalorder %s27, 0
      %p311 = por %p309, %p310
      %p312 = scmp.le.s32.totalorder 1, %s21
      %p313 = scmp.lt.s32.totalorder %s21, 3
      %p314 = pnand %p312, %p313
      %p315 = pneg %p314
      // Predicated region
      $region9: #{tpu_custom_call.1} parent=5 // pred_check
        _
      $region10: #{tpu_custom_call.1} parent=5 // pred_check_branch
        %317 = sbr.rel (%p314) target = $region12
      $region11: #{tpu_custom_call.1} parent=5 // pred_region
        %s318 = ssub.s32 %s21, 1
        // Predicated region
        $region13: #{tpu_custom_call.1} parent=11 // pred_check
          %p319 = pneg %p68
        $region14: #{tpu_custom_call.1} parent=11 // pred_check_branch
          %321 = sbr.rel (%p319) target = $region16
        $region15: #{tpu_custom_call.1} parent=11 // pred_region
          _
        $region16: #{tpu_custom_call.1} parent=11 // pred_fallthru
          _
        // Predicated region
        $region17: #{tpu_custom_call.1} parent=11 // pred_check
          %p322 = pneg %p89
        $region18: #{tpu_custom_call.1} parent=11 // pred_check_branch
          %324 = sbr.rel (%p322) target = $region20
        $region19: #{tpu_custom_call.1} parent=11 // pred_region
          _
        $region20: #{tpu_custom_call.1} parent=11 // pred_fallthru
          _
        // Predicated region
        $region21: #{tpu_custom_call.1} parent=11 // pred_check
          %p325 = pneg %p110
        $region22: #{tpu_custom_call.1} parent=11 // pred_check_branch
          %327 = sbr.rel (%p325) target = $region24
        $region23: #{tpu_custom_call.1} parent=11 // pred_region
          _
        $region24: #{tpu_custom_call.1} parent=11 // pred_fallthru
          _
        // Predicated region
        $region25: #{tpu_custom_call.1} parent=11 // pred_check
          %p328 = pneg %p131
        $region26: #{tpu_custom_call.1} parent=11 // pred_check_branch
          %330 = sbr.rel (%p328) target = $region28
        $region27: #{tpu_custom_call.1} parent=11 // pred_region
          _
        $region28: #{tpu_custom_call.1} parent=11 // pred_fallthru
          _
        // Predicated region
        $region29: #{tpu_custom_call.1} parent=11 // pred_check
          %p331 = pneg %p152
        $region30: #{tpu_custom_call.1} parent=11 // pred_check_branch
          %333 = sbr.rel (%p331) target = $region32
        $region31: #{tpu_custom_call.1} parent=11 // pred_region
          _
        $region32: #{tpu_custom_call.1} parent=11 // pred_fallthru
          _
        // Predicated region
        $region33: #{tpu_custom_call.1} parent=11 // pred_check
          %p334 = pneg %p173
        $region34: #{tpu_custom_call.1} parent=11 // pred_check_branch
          %336 = sbr.rel (%p334) target = $region36
        $region35: #{tpu_custom_call.1} parent=11 // pred_region
          _
        $region36: #{tpu_custom_call.1} parent=11 // pred_fallthru
          _
        // Predicated region
        $region37: #{tpu_custom_call.1} parent=11 // pred_check
          %p337 = pneg %p194
        $region38: #{tpu_custom_call.1} parent=11 // pred_check_branch
          %339 = sbr.rel (%p337) target = $region40
        $region39: #{tpu_custom_call.1} parent=11 // pred_region
          _
        $region40: #{tpu_custom_call.1} parent=11 // pred_fallthru
          _
        // Predicated region
        $region41: #{tpu_custom_call.1} parent=11 // pred_check
          %p340 = pneg %p215
        $region42: #{tpu_custom_call.1} parent=11 // pred_check_branch
          %342 = sbr.rel (%p340) target = $region44
        $region43: #{tpu_custom_call.1} parent=11 // pred_region
          _
        $region44: #{tpu_custom_call.1} parent=11 // pred_fallthru
          _
        // Predicated region
        $region45: #{tpu_custom_call.1} parent=11 // pred_check
          %p343 = pneg %p236
        $region46: #{tpu_custom_call.1} parent=11 // pred_check_branch
          %345 = sbr.rel (%p343) target = $region48
        $region47: #{tpu_custom_call.1} parent=11 // pred_region
          _
        $region48: #{tpu_custom_call.1} parent=11 // pred_fallthru
          _
        // Predicated region
        $region49: #{tpu_custom_call.1} parent=11 // pred_check
          %p346 = pneg %p257
        $region50: #{tpu_custom_call.1} parent=11 // pred_check_branch
          %348 = sbr.rel (%p346) target = $region52
        $region51: #{tpu_custom_call.1} parent=11 // pred_region
          _
        $region52: #{tpu_custom_call.1} parent=11 // pred_fallthru
          _
        // Predicated region
        $region53: #{tpu_custom_call.1} parent=11 // pred_check
          %p349 = pneg %p278
        $region54: #{tpu_custom_call.1} parent=11 // pred_check_branch
          %351 = sbr.rel (%p349) target = $region56
        $region55: #{tpu_custom_call.1} parent=11 // pred_region
          _
        $region56: #{tpu_custom_call.1} parent=11 // pred_fallthru
          _
      $region12: #{tpu_custom_call.1} parent=5 // pred_fallthru
        _
      %p352 = scmp.lt.s32.totalorder %s21, 2
      // Predicated region
      $region57: #{tpu_custom_call.1} parent=5 // pred_check
        %p353 = pneg %p352
      $region58: #{tpu_custom_call.1} parent=5 // pred_check_branch
        %355 = sbr.rel (%p353) target = $region60
      $region59: #{tpu_custom_call.1} parent=5 // pred_region
        // Predicated region
        $region61: #{tpu_custom_call.1} parent=59 // pred_check
          %p356 = pneg %p41
        $region62: #{tpu_custom_call.1} parent=59 // pred_check_branch
          %358 = sbr.rel (%p356) target = $region64
        $region63: #{tpu_custom_call.1} parent=59 // pred_region
          %p359 = scmp.lt.s32.totalorder %s21, 1
          %s360 = scalar_select %p359, %s21, 1
          %s361 = smul.addr %s360, 8
          %s362 = scalar_lea.vmem %s0, %s361
        $region64: #{tpu_custom_call.1} parent=59 // pred_fallthru
          _
      $region60: #{tpu_custom_call.1} parent=5 // pred_fallthru
        _
      %p363 = scmp.le.s32.totalorder 1, %s21
      %p364 = scmp.lt.s32.totalorder %s21, 3
      %p365 = pnand %p363, %p364
      %p366 = pneg %p365
      // Predicated region
      $region65: #{tpu_custom_call.1} parent=5 // pred_check
        _
      $region66: #{tpu_custom_call.1} parent=5 // pred_check_branch
        %368 = sbr.rel (%p365) target = $region68
      $region67: #{tpu_custom_call.1} parent=5 // pred_region
        %s369 = ssub.s32 %s21, 1
        %p370 = scmp.lt.s32.totalorder %s26, 1
        %s371 = scalar_select %p370, %s26, 1
        %s372 = smul.addr %s371, 8
        %s373 = scalar_lea.vmem %s0, %s372
        %p374 = pneg %p47
        %p375 = pneg %p44
        %p376 = pneg %p68
        %p377 = pneg %p65
        %p378 = pneg %p89
        %p379 = pneg %p86
        %p380 = pneg %p110
        %p381 = pneg %p107
        %p382 = pneg %p131
        %p383 = pneg %p128
        %p384 = pneg %p152
        %p385 = pneg %p149
        %p386 = pneg %p173
        %p387 = pneg %p170
        %p388 = pneg %p194
        %p389 = pneg %p191
        %p390 = pneg %p215
        %p391 = pneg %p212
        %p392 = pneg %p236
        %p393 = pneg %p233
        %p394 = pneg %p257
        %p395 = pneg %p254
        %p396 = pneg %p278
        %p397 = pneg %p275
        %p398 = pneg %p304
        %p399 = pneg %p301
        %s400 = sand.u32 %s291, 1
        %s401 = scalar_lea.sflag [#allocation3], %s400
        %s402 = sand.u32 %s291, 1
        %s403 = smul.addr %s402, 8
        %s404 = scalar_lea.vmem [#allocation2], %s403
        %p405 = scmp.lt.s32.totalorder %s26, 1
        %s406 = scalar_select %p405, %s26, 1
        %s407 = smul.addr %s406, 8
        %s408 = scalar_lea.vmem %s0, %s407
        %v410 = vld [vmem:[%s408] sm:$0xff]
        %v411 = vpack.c.bf16 %v410, %v410
        %v412 = vld [vmem:[%s1] sm:$0xff]
        %v413 = vld [vmem:[%s2] sm:$0xf]
        %v414 = vld [vmem:[%s2 + $0x4] sm:$0xf]
        %v415 = vld [vmem:[%s2 + $0x8] sm:$0xf]
        %v416 = vld [vmem:[%s2 + $0xc] sm:$0xf]
        %v421 = vunpack.c.l.b16 %v413
        %v422 = vunpack.c.l.b16 %v414
        %v423 = vunpack.c.l.b16 %v415
        %v424 = vunpack.c.l.b16 %v416
        %v425 = vpack.c.b16 %v422, %v421
        %v426 = vpack.c.b16 %v424, %v423
        %vm429 = vcmask 261120
        %v431 = vsel %vm429, %v411, 0
        %433 = vmatprep.subr.bf16.mxu0 0
        %434 = vmatpush1.bf16.msra.mxu0 %v425
        %435 = vmatprep.subr.bf16.mxu0 0
        %436 = vmatpush1.bf16.msra.mxu0 %v426
        %437 = vmatprep.subr.bf16.mxu0 0
        %438 = vmatpush1.bf16.msra.mxu0 0
        %439 = vmatprep.subr.bf16.mxu0 0
        %440 = vmatpush1.bf16.msra.mxu0 0
        %441 = vmatprep.subr.bf16.mxu0 0
        %442 = vmatpush1.bf16.msra.mxu0 0
        %443 = vmatprep.subr.bf16.mxu0 0
        %444 = vmatpush1.bf16.msra.mxu0 0
        %445 = vmatprep.subr.bf16.mxu0 0
        %446 = vmatpush1.bf16.msra.mxu0 0
        %447 = vmatprep.subr.bf16.mxu0 0
        %448 = vmatpush1.bf16.msra.mxu0 0
        %449 = vmatprep.subr.bf16.mxu0 0
        %450 = vmatpush1.bf16.msra.mxu0 0
        %451 = vmatprep.subr.bf16.mxu0 0
        %452 = vmatpush1.bf16.msra.mxu0 0
        %453 = vmatprep.subr.bf16.mxu0 0
        %454 = vmatpush1.bf16.msra.mxu0 0
        %455 = vmatprep.subr.bf16.mxu0 0
        %456 = vmatpush1.bf16.msra.mxu0 0
        %457 = vmatprep.subr.bf16.mxu0 0
        %458 = vmatpush1.bf16.msra.mxu0 0
        %459 = vmatprep.subr.bf16.mxu0 0
        %460 = vmatpush1.bf16.msra.mxu0 0
        %461 = vmatprep.subr.bf16.mxu0 0
        %462 = vmatpush1.bf16.msra.mxu0 0
        %463 = vmatprep.subr.bf16.mxu0 0
        %464 = vmatpush1.bf16.msra.mxu0 0
        %465 = vmatprep.mubr.bf16.mxu0 0
        %466 = vmatmul.mubr.bf16.gmra.mrb[0].mxu0 %v431
        %v467 = vpop.f32.mrb[0].mxu0
        %v468 = vadd.f32 0.0, %v467
        %v469 = vpop.f32.mrb[0].mxu0
        %v470 = vpop.f32.mrb[0].mxu0
        %v471 = vpop.f32.mrb[0].mxu0
        %472 = vdwg.mxu0
        %v473 = vld [vmem:[%s3] sm:$0xf]
        %v474 = vld [vmem:[%s3 + $0x4] sm:$0xf]
        %v475 = vld [vmem:[%s3 + $0x8] sm:$0xf]
        %v476 = vld [vmem:[%s3 + $0xc] sm:$0xf]
        %v481 = vunpack.c.l.b16 %v473
        %v482 = vunpack.c.l.b16 %v474
        %v483 = vunpack.c.l.b16 %v475
        %v484 = vunpack.c.l.b16 %v476
        %v485 = vpack.c.b16 %v482, %v481
        %v486 = vpack.c.b16 %v484, %v483
        %489 = vmatprep.subr.bf16.mxu0 0
        %490 = vmatpush1.bf16.msra.mxu0 %v485
        %491 = vmatprep.subr.bf16.mxu0 0
        %492 = vmatpush1.bf16.msra.mxu0 %v486
        %493 = vmatprep.subr.bf16.mxu0 0
        %494 = vmatpush1.bf16.msra.mxu0 0
        %495 = vmatprep.subr.bf16.mxu0 0
        %496 = vmatpush1.bf16.msra.mxu0 0
        %497 = vmatprep.subr.bf16.mxu0 0
        %498 = vmatpush1.bf16.msra.mxu0 0
        %499 = vmatprep.subr.bf16.mxu0 0
        %500 = vmatpush1.bf16.msra.mxu0 0
        %501 = vmatprep.subr.bf16.mxu0 0
        %502 = vmatpush1.bf16.msra.mxu0 0
        %503 = vmatprep.subr.bf16.mxu0 0
        %504 = vmatpush1.bf16.msra.mxu0 0
        %505 = vmatprep.subr.bf16.mxu0 0
        %506 = vmatpush1.bf16.msra.mxu0 0
        %507 = vmatprep.subr.bf16.mxu0 0
        %508 = vmatpush1.bf16.msra.mxu0 0
        %509 = vmatprep.subr.bf16.mxu0 0
        %510 = vmatpush1.bf16.msra.mxu0 0
        %511 = vmatprep.subr.bf16.mxu0 0
        %512 = vmatpush1.bf16.msra.mxu0 0
        %513 = vmatprep.subr.bf16.mxu0 0
        %514 = vmatpush1.bf16.msra.mxu0 0
        %515 = vmatprep.subr.bf16.mxu0 0
        %516 = vmatpush1.bf16.msra.mxu0 0
        %517 = vmatprep.subr.bf16.mxu0 0
        %518 = vmatpush1.bf16.msra.mxu0 0
        %519 = vmatprep.subr.bf16.mxu0 0
        %520 = vmatpush1.bf16.msra.mxu0 0
        %521 = vmatprep.mubr.bf16.mxu0 0
        %522 = vmatmul.mubr.bf16.gmra.mrb[0].mxu0 %v431
        %v523 = vpop.f32.mrb[0].mxu0
        %v524 = vadd.f32 0.0, %v523
        %v525 = vpop.f32.mrb[0].mxu0
        %v526 = vpop.f32.mrb[0].mxu0
        %v527 = vpop.f32.mrb[0].mxu0
        %528 = vdwg.mxu0
        %v529 = vld [vmem:[%s4] sm:$0xf]
        %v530 = vld [vmem:[%s4 + $0x4] sm:$0xf]
        %v531 = vld [vmem:[%s4 + $0x8] sm:$0xf]
        %v532 = vld [vmem:[%s4 + $0xc] sm:$0xf]
        %v537 = vunpack.c.l.b16 %v529
        %v538 = vunpack.c.l.b16 %v530
        %v539 = vunpack.c.l.b16 %v531
        %v540 = vunpack.c.l.b16 %v532
        %v541 = vpack.c.b16 %v538, %v537
        %v542 = vpack.c.b16 %v540, %v539
        %545 = vmatprep.subr.bf16.mxu0 0
        %546 = vmatpush1.bf16.msra.mxu0 %v541
        %547 = vmatprep.subr.bf16.mxu0 0
        %548 = vmatpush1.bf16.msra.mxu0 %v542
        %549 = vmatprep.subr.bf16.mxu0 0
        %550 = vmatpush1.bf16.msra.mxu0 0
        %551 = vmatprep.subr.bf16.mxu0 0
        %552 = vmatpush1.bf16.msra.mxu0 0
        %553 = vmatprep.subr.bf16.mxu0 0
        %554 = vmatpush1.bf16.msra.mxu0 0
        %555 = vmatprep.subr.bf16.mxu0 0
        %556 = vmatpush1.bf16.msra.mxu0 0
        %557 = vmatprep.subr.bf16.mxu0 0
        %558 = vmatpush1.bf16.msra.mxu0 0
        %559 = vmatprep.subr.bf16.mxu0 0
        %560 = vmatpush1.bf16.msra.mxu0 0
        %561 = vmatprep.subr.bf16.mxu0 0
        %562 = vmatpush1.bf16.msra.mxu0 0
        %563 = vmatprep.subr.bf16.mxu0 0
        %564 = vmatpush1.bf16.msra.mxu0 0
        %565 = vmatprep.subr.bf16.mxu0 0
        %566 = vmatpush1.bf16.msra.mxu0 0
        %567 = vmatprep.subr.bf16.mxu0 0
        %568 = vmatpush1.bf16.msra.mxu0 0
        %569 = vmatprep.subr.bf16.mxu0 0
        %570 = vmatpush1.bf16.msra.mxu0 0
        %571 = vmatprep.subr.bf16.mxu0 0
        %572 = vmatpush1.bf16.msra.mxu0 0
        %573 = vmatprep.subr.bf16.mxu0 0
        %574 = vmatpush1.bf16.msra.mxu0 0
        %575 = vmatprep.subr.bf16.mxu0 0
        %576 = vmatpush1.bf16.msra.mxu0 0
        %577 = vmatprep.mubr.bf16.mxu0 0
        %578 = vmatmul.mubr.bf16.gmra.mrb[0].mxu0 %v431
        %v579 = vpop.f32.mrb[0].mxu0
        %v580 = vadd.f32 0.0, %v579
        %v581 = vpop.f32.mrb[0].mxu0
        %v582 = vpop.f32.mrb[0].mxu0
        %v583 = vpop.f32.mrb[0].mxu0
        %584 = vdwg.mxu0
        %v585 = vpack.c.bf16 %v468, %v468
        %v586 = vpack.c.bf16 %v524, %v524
        %vm587 = vcmask 64512
        %v589 = vsel %vm587, %v585, 0
        %v592 = vsel %vm587, %v586, 0
        %594 = vmatprep.subr.bf16.mxu0 0
        %595 = vmatpush1.bf16.xpose.msra.mxu0 %v592
        %596 = vmatprep.subr.bf16.mxu0 0
        %597 = vmatpush1.bf16.xpose.msra.mxu0 0
        %598 = vmatprep.subr.bf16.mxu0 0
        %599 = vmatpush1.bf16.xpose.msra.mxu0 0
        %600 = vmatprep.subr.bf16.mxu0 0
        %601 = vmatpush1.bf16.xpose.msra.mxu0 0
        %602 = vmatprep.subr.bf16.mxu0 0
        %603 = vmatpush1.bf16.xpose.msra.mxu0 0
        %604 = vmatprep.subr.bf16.mxu0 0
        %605 = vmatpush1.bf16.xpose.msra.mxu0 0
        %606 = vmatprep.subr.bf16.mxu0 0
        %607 = vmatpush1.bf16.xpose.msra.mxu0 0
        %608 = vmatprep.subr.bf16.mxu0 0
        %609 = vmatpush1.bf16.xpose.msra.mxu0 0
        %610 = vmatprep.subr.bf16.mxu0 0
        %611 = vmatpush1.bf16.xpose.msra.mxu0 0
        %612 = vmatprep.subr.bf16.mxu0 0
        %613 = vmatpush1.bf16.xpose.msra.mxu0 0
        %614 = vmatprep.subr.bf16.mxu0 0
        %615 = vmatpush1.bf16.xpose.msra.mxu0 0
        %616 = vmatprep.subr.bf16.mxu0 0
        %617 = vmatpush1.bf16.xpose.msra.mxu0 0
        %618 = vmatprep.subr.bf16.mxu0 0
        %619 = vmatpush1.bf16.xpose.msra.mxu0 0
        %620 = vmatprep.subr.bf16.mxu0 0
        %621 = vmatpush1.bf16.xpose.msra.mxu0 0
        %622 = vmatprep.subr.bf16.mxu0 0
        %623 = vmatpush1.bf16.xpose.msra.mxu0 0
        %624 = vmatprep.subr.bf16.mxu0 0
        %625 = vmatpush1.bf16.xpose.msra.mxu0 0
        %626 = vmatprep.mubr.bf16.mxu0 0
        %627 = vmatmul.mubr.bf16.gmra.mrb[0].mxu0 %v589
        %v628 = vpop.f32.mrb[0].mxu0
        %v629 = vadd.f32 %v412, %v628
        %v630 = vpop.f32.mrb[0].mxu0
        %v631 = vpop.f32.mrb[0].mxu0
        %v632 = vpop.f32.mrb[0].mxu0
        %633 = vdwg.mxu0
        %v634 = vsel %vm587, %v629, -inf
        %635 = vmax.xlane.f32.xlu0 %v634
        %v636 = vpop.xlane.xlu0 %635
        %v637 = vsub.f32 %v629, %v636
        %v638 = vmul.f32 %v637, 1.442695
        %v639 = vpow.pop %v638
        %v640 = vsel %vm587, %v639, 0.0
        %641 = vadd.xlane.f32.xlu0 %v640
        %v642 = vpop.xlane.xlu0 %641
        %v643 = vrcp.pop %v642
        %v644 = vmul.f32 %v639, %v643
        %v645 = vpack.c.bf16 %v644, %v644
        %v646 = vpack.c.bf16 %v580, %v580
        %v648 = vsel %vm587, %v645, 0
        %vm650 = vcmask 1043456
        %v652 = vsel %vm650, %v646, 0
        %654 = vmatprep.subr.bf16.mxu0 0
        %655 = vmatpush1.bf16.msra.mxu0 %v652
        %656 = vmatprep.subr.bf16.mxu0 0
        %657 = vmatpush1.bf16.msra.mxu0 0
        %658 = vmatprep.subr.bf16.mxu0 0
        %659 = vmatpush1.bf16.msra.mxu0 0
        %660 = vmatprep.subr.bf16.mxu0 0
        %661 = vmatpush1.bf16.msra.mxu0 0
        %662 = vmatprep.subr.bf16.mxu0 0
        %663 = vmatpush1.bf16.msra.mxu0 0
        %664 = vmatprep.subr.bf16.mxu0 0
        %665 = vmatpush1.bf16.msra.mxu0 0
        %666 = vmatprep.subr.bf16.mxu0 0
        %667 = vmatpush1.bf16.msra.mxu0 0
        %668 = vmatprep.subr.bf16.mxu0 0
        %669 = vmatpush1.bf16.msra.mxu0 0
        %670 = vmatprep.subr.bf16.mxu0 0
        %671 = vmatpush1.bf16.msra.mxu0 0
        %672 = vmatprep.subr.bf16.mxu0 0
        %673 = vmatpush1.bf16.msra.mxu0 0
        %674 = vmatprep.subr.bf16.mxu0 0
        %675 = vmatpush1.bf16.msra.mxu0 0
        %676 = vmatprep.subr.bf16.mxu0 0
        %677 = vmatpush1.bf16.msra.mxu0 0
        %678 = vmatprep.subr.bf16.mxu0 0
        %679 = vmatpush1.bf16.msra.mxu0 0
        %680 = vmatprep.subr.bf16.mxu0 0
        %681 = vmatpush1.bf16.msra.mxu0 0
        %682 = vmatprep.subr.bf16.mxu0 0
        %683 = vmatpush1.bf16.msra.mxu0 0
        %684 = vmatprep.subr.bf16.mxu0 0
        %685 = vmatpush1.bf16.msra.mxu0 0
        %686 = vmatprep.mubr.bf16.mxu0 0
        %687 = vmatmul.mubr.bf16.gmra.mrb[0].mxu0 %v648
        %v688 = vpop.f32.mrb[0].mxu0
        %v689 = vadd.f32 0.0, %v688
        %v690 = vpop.f32.mrb[0].mxu0
        %v691 = vpop.f32.mrb[0].mxu0
        %v692 = vpop.f32.mrb[0].mxu0
        %693 = vdwg.mxu0
        %v694 = vpack.c.bf16 %v689, %v689
        %v695 = vld [vmem:[%s5] sm:$0xf]
        %s696 = scalar_lea.vmem %s2, 16
        %v697 = vld [vmem:[%s696] sm:$0xf]
        %v698 = vld [vmem:[%s696 + $0x4] sm:$0xf]
        %v699 = vld [vmem:[%s696 + $0x8] sm:$0xf]
        %v700 = vld [vmem:[%s696 + $0xc] sm:$0xf]
        %v705 = vunpack.c.l.b16 %v697
        %v706 = vunpack.c.l.b16 %v698
        %v707 = vunpack.c.l.b16 %v699
        %v708 = vunpack.c.l.b16 %v700
        %v709 = vpack.c.b16 %v706, %v705
        %v710 = vpack.c.b16 %v708, %v707
        %713 = vmatprep.subr.bf16.mxu0 0
        %714 = vmatpush1.bf16.msra.mxu0 %v709
        %715 = vmatprep.subr.bf16.mxu0 0
        %716 = vmatpush1.bf16.msra.mxu0 %v710
        %717 = vmatprep.subr.bf16.mxu0 0
        %718 = vmatpush1.bf16.msra.mxu0 0
        %719 = vmatprep.subr.bf16.mxu0 0
        %720 = vmatpush1.bf16.msra.mxu0 0
        %721 = vmatprep.subr.bf16.mxu0 0
        %722 = vmatpush1.bf16.msra.mxu0 0
        %723 = vmatprep.subr.bf16.mxu0 0
        %724 = vmatpush1.bf16.msra.mxu0 0
        %725 = vmatprep.subr.bf16.mxu0 0
        %726 = vmatpush1.bf16.msra.mxu0 0
        %727 = vmatprep.subr.bf16.mxu0 0
        %728 = vmatpush1.bf16.msra.mxu0 0
        %729 = vmatprep.subr.bf16.mxu0 0
        %730 = vmatpush1.bf16.msra.mxu0 0
        %731 = vmatprep.subr.bf16.mxu0 0
        %732 = vmatpush1.bf16.msra.mxu0 0
        %733 = vmatprep.subr.bf16.mxu0 0
        %734 = vmatpush1.bf16.msra.mxu0 0
        %735 = vmatprep.subr.bf16.mxu0 0
        %736 = vmatpush1.bf16.msra.mxu0 0
        %737 = vmatprep.subr.bf16.mxu0 0
        %738 = vmatpush1.bf16.msra.mxu0 0
        %739 = vmatprep.subr.bf16.mxu0 0
        %740 = vmatpush1.bf16.msra.mxu0 0
        %741 = vmatprep.subr.bf16.mxu0 0
        %742 = vmatpush1.bf16.msra.mxu0 0
        %743 = vmatprep.subr.bf16.mxu0 0
        %744 = vmatpush1.bf16.msra.mxu0 0
        %745 = vmatprep.mubr.bf16.mxu0 0
        %746 = vmatmul.mubr.bf16.gmra.mrb[0].mxu0 %v431
        %v747 = vpop.f32.mrb[0].mxu0
        %v748 = vadd.f32 0.0, %v747
        %v749 = vpop.f32.mrb[0].mxu0
        %v750 = vpop.f32.mrb[0].mxu0
        %v751 = vpop.f32.mrb[0].mxu0
        %752 = vdwg.mxu0
        %s753 = scalar_lea.vmem %s3, 16
        %v754 = vld [vmem:[%s753] sm:$0xf]
        %v755 = vld [vmem:[%s753 + $0x4] sm:$0xf]
        %v756 = vld [vmem:[%s753 + $0x8] sm:$0xf]
        %v757 = vld [vmem:[%s753 + $0xc] sm:$0xf]
        %v762 = vunpack.c.l.b16 %v754
        %v763 = vunpack.c.l.b16 %v755
        %v764 = vunpack.c.l.b16 %v756
        %v765 = vunpack.c.l.b16 %v757
        %v766 = vpack.c.b16 %v763, %v762
        %v767 = vpack.c.b16 %v765, %v764
        %770 = vmatprep.subr.bf16.mxu0 0
        %771 = vmatpush1.bf16.msra.mxu0 %v766
        %772 = vmatprep.subr.bf16.mxu0 0
        %773 = vmatpush1.bf16.msra.mxu0 %v767
        %774 = vmatprep.subr.bf16.mxu0 0
        %775 = vmatpush1.bf16.msra.mxu0 0
        %776 = vmatprep.subr.bf16.mxu0 0
        %777 = vmatpush1.bf16.msra.mxu0 0
        %778 = vmatprep.subr.bf16.mxu0 0
        %779 = vmatpush1.bf16.msra.mxu0 0
        %780 = vmatprep.subr.bf16.mxu0 0
        %781 = vmatpush1.bf16.msra.mxu0 0
        %782 = vmatprep.subr.bf16.mxu0 0
        %783 = vmatpush1.bf16.msra.mxu0 0
        %784 = vmatprep.subr.bf16.mxu0 0
        %785 = vmatpush1.bf16.msra.mxu0 0
        %786 = vmatprep.subr.bf16.mxu0 0
        %787 = vmatpush1.bf16.msra.mxu0 0
        %788 = vmatprep.subr.bf16.mxu0 0
        %789 = vmatpush1.bf16.msra.mxu0 0
        %790 = vmatprep.subr.bf16.mxu0 0
        %791 = vmatpush1.bf16.msra.mxu0 0
        %792 = vmatprep.subr.bf16.mxu0 0
        %793 = vmatpush1.bf16.msra.mxu0 0
        %794 = vmatprep.subr.bf16.mxu0 0
        %795 = vmatpush1.bf16.msra.mxu0 0
        %796 = vmatprep.subr.bf16.mxu0 0
        %797 = vmatpush1.bf16.msra.mxu0 0
        %798 = vmatprep.subr.bf16.mxu0 0
        %799 = vmatpush1.bf16.msra.mxu0 0
        %800 = vmatprep.subr.bf16.mxu0 0
        %801 = vmatpush1.bf16.msra.mxu0 0
        %802 = vmatprep.mubr.bf16.mxu0 0
        %803 = vmatmul.mubr.bf16.gmra.mrb[0].mxu0 %v431
        %v804 = vpop.f32.mrb[0].mxu0
        %v805 = vadd.f32 0.0, %v804
        %v806 = vpop.f32.mrb[0].mxu0
        %v807 = vpop.f32.mrb[0].mxu0
        %v808 = vpop.f32.mrb[0].mxu0
        %809 = vdwg.mxu0
        %s810 = scalar_lea.vmem %s4, 16
        %v811 = vld [vmem:[%s810] sm:$0xf]
        %v812 = vld [vmem:[%s810 + $0x4] sm:$0xf]
        %v813 = vld [vmem:[%s810 + $0x8] sm:$0xf]
        %v814 = vld [vmem:[%s810 + $0xc] sm:$0xf]
        %v819 = vunpack.c.l.b16 %v811
        %v820 = vunpack.c.l.b16 %v812
        %v821 = vunpack.c.l.b16 %v813
        %v822 = vunpack.c.l.b16 %v814
        %v823 = vpack.c.b16 %v820, %v819
        %v824 = vpack.c.b16 %v822, %v821
        %827 = vmatprep.subr.bf16.mxu0 0
        %828 = vmatpush1.bf16.msra.mxu0 %v823
        %829 = vmatprep.subr.bf16.mxu0 0
        %830 = vmatpush1.bf16.msra.mxu0 %v824
        %831 = vmatprep.subr.bf16.mxu0 0
        %832 = vmatpush1.bf16.msra.mxu0 0
        %833 = vmatprep.subr.bf16.mxu0 0
        %834 = vmatpush1.bf16.msra.mxu0 0
        %835 = vmatprep.subr.bf16.mxu0 0
        %836 = vmatpush1.bf16.msra.mxu0 0
        %837 = vmatprep.subr.bf16.mxu0 0
        %838 = vmatpush1.bf16.msra.mxu0 0
        %839 = vmatprep.subr.bf16.mxu0 0
        %840 = vmatpush1.bf16.msra.mxu0 0
        %841 = vmatprep.subr.bf16.mxu0 0
        %842 = vmatpush1.bf16.msra.mxu0 0
        %843 = vmatprep.subr.bf16.mxu0 0
        %844 = vmatpush1.bf16.msra.mxu0 0
        %845 = vmatprep.subr.bf16.mxu0 0
        %846 = vmatpush1.bf16.msra.mxu0 0
        %847 = vmatprep.subr.bf16.mxu0 0
        %848 = vmatpush1.bf16.msra.mxu0 0
        %849 = vmatprep.subr.bf16.mxu0 0
        %850 = vmatpush1.bf16.msra.mxu0 0
        %851 = vmatprep.subr.bf16.mxu0 0
        %852 = vmatpush1.bf16.msra.mxu0 0
        %853 = vmatprep.subr.bf16.mxu0 0
        %854 = vmatpush1.bf16.msra.mxu0 0
        %855 = vmatprep.subr.bf16.mxu0 0
        %856 = vmatpush1.bf16.msra.mxu0 0
        %857 = vmatprep.subr.bf16.mxu0 0
        %858 = vmatpush1.bf16.msra.mxu0 0
        %859 = vmatprep.mubr.bf16.mxu0 0
        %860 = vmatmul.mubr.bf16.gmra.mrb[0].mxu0 %v431
        %v861 = vpop.f32.mrb[0].mxu0
        %v862 = vadd.f32 0.0, %v861
        %v863 = vpop.f32.mrb[0].mxu0
        %v864 = vpop.f32.mrb[0].mxu0
        %v865 = vpop.f32.mrb[0].mxu0
        %866 = vdwg.mxu0
        %v867 = vpack.c.bf16 %v748, %v748
        %v868 = vpack.c.bf16 %v805, %v805
        %v870 = vsel %vm587, %v867, 0
        %v873 = vsel %vm587, %v868, 0
        %875 = vmatprep.subr.bf16.mxu0 0
        %876 = vmatpush1.bf16.xpose.msra.mxu0 %v873
        %877 = vmatprep.subr.bf16.mxu0 0
        %878 = vmatpush1.bf16.xpose.msra.mxu0 0
        %879 = vmatprep.subr.bf16.mxu0 0
        %880 = vmatpush1.bf16.xpose.msra.mxu0 0
        %881 = vmatprep.subr.bf16.mxu0 0
        %882 = vmatpush1.bf16.xpose.msra.mxu0 0
        %883 = vmatprep.subr.bf16.mxu0 0
        %884 = vmatpush1.bf16.xpose.msra.mxu0 0
        %885 = vmatprep.subr.bf16.mxu0 0
        %886 = vmatpush1.bf16.xpose.msra.mxu0 0
        %887 = vmatprep.subr.bf16.mxu0 0
        %888 = vmatpush1.bf16.xpose.msra.mxu0 0
        %889 = vmatprep.subr.bf16.mxu0 0
        %890 = vmatpush1.bf16.xpose.msra.mxu0 0
        %891 = vmatprep.subr.bf16.mxu0 0
        %892 = vmatpush1.bf16.xpose.msra.mxu0 0
        %893 = vmatprep.subr.bf16.mxu0 0
        %894 = vmatpush1.bf16.xpose.msra.mxu0 0
        %895 = vmatprep.subr.bf16.mxu0 0
        %896 = vmatpush1.bf16.xpose.msra.mxu0 0
        %897 = vmatprep.subr.bf16.mxu0 0
        %898 = vmatpush1.bf16.xpose.msra.mxu0 0
        %899 = vmatprep.subr.bf16.mxu0 0
        %900 = vmatpush1.bf16.xpose.msra.mxu0 0
        %901 = vmatprep.subr.bf16.mxu0 0
        %902 = vmatpush1.bf16.xpose.msra.mxu0 0
        %903 = vmatprep.subr.bf16.mxu0 0
        %904 = vmatpush1.bf16.xpose.msra.mxu0 0
        %905 = vmatprep.subr.bf16.mxu0 0
        %906 = vmatpush1.bf16.xpose.msra.mxu0 0
        %907 = vmatprep.mubr.bf16.mxu0 0
        %908 = vmatmul.mubr.bf16.gmra.mrb[0].mxu0 %v870
        %v909 = vpop.f32.mrb[0].mxu0
        %v910 = vadd.f32 %v412, %v909
        %v911 = vpop.f32.mrb[0].mxu0
        %v912 = vpop.f32.mrb[0].mxu0
        %v913 = vpop.f32.mrb[0].mxu0
        %914 = vdwg.mxu0
        %v915 = vsel %vm587, %v910, -inf
        %916 = vmax.xlane.f32.xlu0 %v915
        %v917 = vpop.xlane.xlu0 %916
        %v918 = vsub.f32 %v910, %v917
        %v919 = vmul.f32 %v918, 1.442695
        %v920 = vpow.pop %v919
        %v921 = vsel %vm587, %v920, 0.0
        %922 = vadd.xlane.f32.xlu0 %v921
        %v923 = vpop.xlane.xlu0 %922
        %v924 = vrcp.pop %v923
        %v925 = vmul.f32 %v920, %v924
        %v926 = vpack.c.bf16 %v925, %v925
        %v927 = vpack.c.bf16 %v862, %v862
        %v929 = vsel %vm587, %v926, 0
        %v932 = vsel %vm650, %v927, 0
        %934 = vmatprep.subr.bf16.mxu0 0
        %935 = vmatpush1.bf16.msra.mxu0 %v932
        %936 = vmatprep.subr.bf16.mxu0 0
        %937 = vmatpush1.bf16.msra.mxu0 0
        %938 = vmatprep.subr.bf16.mxu0 0
        %939 = vmatpush1.bf16.msra.mxu0 0
        %940 = vmatprep.subr.bf16.mxu0 0
        %941 = vmatpush1.bf16.msra.mxu0 0
        %942 = vmatprep.subr.bf16.mxu0 0
        %943 = vmatpush1.bf16.msra.mxu0 0
        %944 = vmatprep.subr.bf16.mxu0 0
        %945 = vmatpush1.bf16.msra.mxu0 0
        %946 = vmatprep.subr.bf16.mxu0 0
        %947 = vmatpush1.bf16.msra.mxu0 0
        %948 = vmatprep.subr.bf16.mxu0 0
        %949 = vmatpush1.bf16.msra.mxu0 0
        %950 = vmatprep.subr.bf16.mxu0 0
        %951 = vmatpush1.bf16.msra.mxu0 0
        %952 = vmatprep.subr.bf16.mxu0 0
        %953 = vmatpush1.bf16.msra.mxu0 0
        %954 = vmatprep.subr.bf16.mxu0 0
        %955 = vmatpush1.bf16.msra.mxu0 0
        %956 = vmatprep.subr.bf16.mxu0 0
        %957 = vmatpush1.bf16.msra.mxu0 0
        %958 = vmatprep.subr.bf16.mxu0 0
        %959 = vmatpush1.bf16.msra.mxu0 0
        %960 = vmatprep.subr.bf16.mxu0 0
        %961 = vmatpush1.bf16.msra.mxu0 0
        %962 = vmatprep.subr.bf16.mxu0 0
        %963 = vmatpush1.bf16.msra.mxu0 0
        %964 = vmatprep.subr.bf16.mxu0 0
        %965 = vmatpush1.bf16.msra.mxu0 0
        %966 = vmatprep.mubr.bf16.mxu0 0
        %967 = vmatmul.mubr.bf16.gmra.mrb[0].mxu0 %v929
        %v968 = vpop.f32.mrb[0].mxu0
        %v969 = vadd.f32 0.0, %v968
        %v970 = vpop.f32.mrb[0].mxu0
        %v971 = vpop.f32.mrb[0].mxu0
        %v972 = vpop.f32.mrb[0].mxu0
        %973 = vdwg.mxu0
        %v974 = vpack.c.bf16 %v969, %v969
        %s975 = scalar_lea.vmem %s5, 4
        %v976 = vld [vmem:[%s975] sm:$0xf]
        %v978 = vsel %vm587, %v974, 0
        %v981 = vsel %vm650, %v976, 0
        %983 = vmatprep.subr.bf16.mxu0 0
        %984 = vmatpush1.bf16.msra.mxu0 %v981
        %985 = vmatprep.subr.bf16.mxu0 0
        %986 = vmatpush1.bf16.msra.mxu0 0
        %987 = vmatprep.subr.bf16.mxu0 0
        %988 = vmatpush1.bf16.msra.mxu0 0
        %989 = vmatprep.subr.bf16.mxu0 0
        %990 = vmatpush1.bf16.msra.mxu0 0
        %991 = vmatprep.subr.bf16.mxu0 0
        %992 = vmatpush1.bf16.msra.mxu0 0
        %993 = vmatprep.subr.bf16.mxu0 0
        %994 = vmatpush1.bf16.msra.mxu0 0
        %995 = vmatprep.subr.bf16.mxu0 0
        %996 = vmatpush1.bf16.msra.mxu0 0
        %997 = vmatprep.subr.bf16.mxu0 0
        %998 = vmatpush1.bf16.msra.mxu0 0
        %999 = vmatprep.subr.bf16.mxu0 0
        %1000 = vmatpush1.bf16.msra.mxu0 0
        %1001 = vmatprep.subr.bf16.mxu0 0
        %1002 = vmatpush1.bf16.msra.mxu0 0
        %1003 = vmatprep.subr.bf16.mxu0 0
        %1004 = vmatpush1.bf16.msra.mxu0 0
        %1005 = vmatprep.subr.bf16.mxu0 0
        %1006 = vmatpush1.bf16.msra.mxu0 0
        %1007 = vmatprep.subr.bf16.mxu0 0
        %1008 = vmatpush1.bf16.msra.mxu0 0
        %1009 = vmatprep.subr.bf16.mxu0 0
        %1010 = vmatpush1.bf16.msra.mxu0 0
        %1011 = vmatprep.subr.bf16.mxu0 0
        %1012 = vmatpush1.bf16.msra.mxu0 0
        %1013 = vmatprep.subr.bf16.mxu0 0
        %1014 = vmatpush1.bf16.msra.mxu0 0
        %1015 = vmatprep.mubr.bf16.mxu0 0
        %1016 = vmatmul.mubr.bf16.gmra.mrb[0].mxu0 %v978
        %v1017 = vpop.f32.mrb[0].mxu0
        %v1018 = vadd.f32 0.0, %v1017
        %v1019 = vpop.f32.mrb[0].mxu0
        %v1020 = vpop.f32.mrb[0].mxu0
        %v1021 = vpop.f32.mrb[0].mxu0
        %1022 = vdwg.mxu0
        %v1024 = vsel %vm587, %v694, 0
        %v1027 = vsel %vm650, %v695, 0
        %1029 = vmatprep.subr.bf16.mxu0 0
        %1030 = vmatpush1.bf16.msra.mxu0 %v1027
        %1031 = vmatprep.subr.bf16.mxu0 0
        %1032 = vmatpush1.bf16.msra.mxu0 0
        %1033 = vmatprep.subr.bf16.mxu0 0
        %1034 = vmatpush1.bf16.msra.mxu0 0
        %1035 = vmatprep.subr.bf16.mxu0 0
        %1036 = vmatpush1.bf16.msra.mxu0 0
        %1037 = vmatprep.subr.bf16.mxu0 0
        %1038 = vmatpush1.bf16.msra.mxu0 0
        %1039 = vmatprep.subr.bf16.mxu0 0
        %1040 = vmatpush1.bf16.msra.mxu0 0
        %1041 = vmatprep.subr.bf16.mxu0 0
        %1042 = vmatpush1.bf16.msra.mxu0 0
        %1043 = vmatprep.subr.bf16.mxu0 0
        %1044 = vmatpush1.bf16.msra.mxu0 0
        %1045 = vmatprep.subr.bf16.mxu0 0
        %1046 = vmatpush1.bf16.msra.mxu0 0
        %1047 = vmatprep.subr.bf16.mxu0 0
        %1048 = vmatpush1.bf16.msra.mxu0 0
        %1049 = vmatprep.subr.bf16.mxu0 0
        %1050 = vmatpush1.bf16.msra.mxu0 0
        %1051 = vmatprep.subr.bf16.mxu0 0
        %1052 = vmatpush1.bf16.msra.mxu0 0
        %1053 = vmatprep.subr.bf16.mxu0 0
        %1054 = vmatpush1.bf16.msra.mxu0 0
        %1055 = vmatprep.subr.bf16.mxu0 0
        %1056 = vmatpush1.bf16.msra.mxu0 0
        %1057 = vmatprep.subr.bf16.mxu0 0
        %1058 = vmatpush1.bf16.msra.mxu0 0
        %1059 = vmatprep.subr.bf16.mxu0 0
        %1060 = vmatpush1.bf16.msra.mxu0 0
        %1061 = vmatprep.mubr.bf16.mxu0 0
        %1062 = vmatmul.mubr.bf16.gmra.mrb[0].mxu0 %v1024
        %v1063 = vpop.f32.mrb[0].mxu0
        %v1064 = vadd.f32 %v1018, %v1063
        %v1065 = vpop.f32.mrb[0].mxu0
        %v1066 = vpop.f32.mrb[0].mxu0
        %v1067 = vpop.f32.mrb[0].mxu0
        %1068 = vdwg.mxu0
        %s1069 = scalar_lea.vmem %s2, 32
        %v1070 = vld [vmem:[%s1069] sm:$0xf]
        %v1071 = vld [vmem:[%s1069 + $0x4] sm:$0xf]
        %v1072 = vld [vmem:[%s1069 + $0x8] sm:$0xf]
        %v1073 = vld [vmem:[%s1069 + $0xc] sm:$0xf]
        %v1078 = vunpack.c.l.b16 %v1070
        %v1079 = vunpack.c.l.b16 %v1071
        %v1080 = vunpack.c.l.b16 %v1072
        %v1081 = vunpack.c.l.b16 %v1073
        %v1082 = vpack.c.b16 %v1079, %v1078
        %v1083 = vpack.c.b16 %v1081, %v1080
        %1086 = vmatprep.subr.bf16.mxu0 0
        %1087 = vmatpush1.bf16.msra.mxu0 %v1082
        %1088 = vmatprep.subr.bf16.mxu0 0
        %1089 = vmatpush1.bf16.msra.mxu0 %v1083
        %1090 = vmatprep.subr.bf16.mxu0 0
        %1091 = vmatpush1.bf16.msra.mxu0 0
        %1092 = vmatprep.subr.bf16.mxu0 0
        %1093 = vmatpush1.bf16.msra.mxu0 0
        %1094 = vmatprep.subr.bf16.mxu0 0
        %1095 = vmatpush1.bf16.msra.mxu0 0
        %1096 = vmatprep.subr.bf16.mxu0 0
        %1097 = vmatpush1.bf16.msra.mxu0 0
        %1098 = vmatprep.subr.bf16.mxu0 0
        %1099 = vmatpush1.bf16.msra.mxu0 0
        %1100 = vmatprep.subr.bf16.mxu0 0
        %1101 = vmatpush1.bf16.msra.mxu0 0
        %1102 = vmatprep.subr.bf16.mxu0 0
        %1103 = vmatpush1.bf16.msra.mxu0 0
        %1104 = vmatprep.subr.bf16.mxu0 0
        %1105 = vmatpush1.bf16.msra.mxu0 0
        %1106 = vmatprep.subr.bf16.mxu0 0
        %1107 = vmatpush1.bf16.msra.mxu0 0
        %1108 = vmatprep.subr.bf16.mxu0 0
        %1109 = vmatpush1.bf16.msra.mxu0 0
        %1110 = vmatprep.subr.bf16.mxu0 0
        %1111 = vmatpush1.bf16.msra.mxu0 0
        %1112 = vmatprep.subr.bf16.mxu0 0
        %1113 = vmatpush1.bf16.msra.mxu0 0
        %1114 = vmatprep.subr.bf16.mxu0 0
        %1115 = vmatpush1.bf16.msra.mxu0 0
        %1116 = vmatprep.subr.bf16.mxu0 0
        %1117 = vmatpush1.bf16.msra.mxu0 0
        %1118 = vmatprep.mubr.bf16.mxu0 0
        %1119 = vmatmul.mubr.bf16.gmra.mrb[0].mxu0 %v431
        %v1120 = vpop.f32.mrb[0].mxu0
        %v1121 = vadd.f32 0.0, %v1120
        %v1122 = vpop.f32.mrb[0].mxu0
        %v1123 = vpop.f32.mrb[0].mxu0
        %v1124 = vpop.f32.mrb[0].mxu0
        %1125 = vdwg.mxu0
        %s1126 = scalar_lea.vmem %s3, 32
        %v1127 = vld [vmem:[%s1126] sm:$0xf]
        %v1128 = vld [vmem:[%s1126 + $0x4] sm:$0xf]
        %v1129 = vld [vmem:[%s1126 + $0x8] sm:$0xf]
        %v1130 = vld [vmem:[%s1126 + $0xc] sm:$0xf]
        %v1135 = vunpack.c.l.b16 %v1127
        %v1136 = vunpack.c.l.b16 %v1128
        %v1137 = vunpack.c.l.b16 %v1129
        %v1138 = vunpack.c.l.b16 %v1130
        %v1139 = vpack.c.b16 %v1136, %v1135
        %v1140 = vpack.c.b16 %v1138, %v1137
        %1143 = vmatprep.subr.bf16.mxu0 0
        %1144 = vmatpush1.bf16.msra.mxu0 %v1139
        %1145 = vmatprep.subr.bf16.mxu0 0
        %1146 = vmatpush1.bf16.msra.mxu0 %v1140
        %1147 = vmatprep.subr.bf16.mxu0 0
        %1148 = vmatpush1.bf16.msra.mxu0 0
        %1149 = vmatprep.subr.bf16.mxu0 0
        %1150 = vmatpush1.bf16.msra.mxu0 0
        %1151 = vmatprep.subr.bf16.mxu0 0
        %1152 = vmatpush1.bf16.msra.mxu0 0
        %1153 = vmatprep.subr.bf16.mxu0 0
        %1154 = vmatpush1.bf16.msra.mxu0 0
        %1155 = vmatprep.subr.bf16.mxu0 0
        %1156 = vmatpush1.bf16.msra.mxu0 0
        %1157 = vmatprep.subr.bf16.mxu0 0
        %1158 = vmatpush1.bf16.msra.mxu0 0
        %1159 = vmatprep.subr.bf16.mxu0 0
        %1160 = vmatpush1.bf16.msra.mxu0 0
        %1161 = vmatprep.subr.bf16.mxu0 0
        %1162 = vmatpush1.bf16.msra.mxu0 0
        %1163 = vmatprep.subr.bf16.mxu0 0
        %1164 = vmatpush1.bf16.msra.mxu0 0
        %1165 = vmatprep.subr.bf16.mxu0 0
        %1166 = vmatpush1.bf16.msra.mxu0 0
        %1167 = vmatprep.subr.bf16.mxu0 0
        %1168 = vmatpush1.bf16.msra.mxu0 0
        %1169 = vmatprep.subr.bf16.mxu0 0
        %1170 = vmatpush1.bf16.msra.mxu0 0
        %1171 = vmatprep.subr.bf16.mxu0 0
        %1172 = vmatpush1.bf16.msra.mxu0 0
        %1173 = vmatprep.subr.bf16.mxu0 0
        %1174 = vmatpush1.bf16.msra.mxu0 0
        %1175 = vmatprep.mubr.bf16.mxu0 0
        %1176 = vmatmul.mubr.bf16.gmra.mrb[0].mxu0 %v431
        %v1177 = vpop.f32.mrb[0].mxu0
        %v1178 = vadd.f32 0.0, %v1177
        %v1179 = vpop.f32.mrb[0].mxu0
        %v1180 = vpop.f32.mrb[0].mxu0
        %v1181 = vpop.f32.mrb[0].mxu0
        %1182 = vdwg.mxu0
        %s1183 = scalar_lea.vmem %s4, 32
        %v1184 = vld [vmem:[%s1183] sm:$0xf]
        %v1185 = vld [vmem:[%s1183 + $0x4] sm:$0xf]
        %v1186 = vld [vmem:[%s1183 + $0x8] sm:$0xf]
        %v1187 = vld [vmem:[%s1183 + $0xc] sm:$0xf]
        %v1192 = vunpack.c.l.b16 %v1184
        %v1193 = vunpack.c.l.b16 %v1185
        %v1194 = vunpack.c.l.b16 %v1186
        %v1195 = vunpack.c.l.b16 %v1187
        %v1196 = vpack.c.b16 %v1193, %v1192
        %v1197 = vpack.c.b16 %v1195, %v1194
        %1200 = vmatprep.subr.bf16.mxu0 0
        %1201 = vmatpush1.bf16.msra.mxu0 %v1196
        %1202 = vmatprep.subr.bf16.mxu0 0
        %1203 = vmatpush1.bf16.msra.mxu0 %v1197
        %1204 = vmatprep.subr.bf16.mxu0 0
        %1205 = vmatpush1.bf16.msra.mxu0 0
        %1206 = vmatprep.subr.bf16.mxu0 0
        %1207 = vmatpush1.bf16.msra.mxu0 0
        %1208 = vmatprep.subr.bf16.mxu0 0
        %1209 = vmatpush1.bf16.msra.mxu0 0
        %1210 = vmatprep.subr.bf16.mxu0 0
        %1211 = vmatpush1.bf16.msra.mxu0 0
        %1212 = vmatprep.subr.bf16.mxu0 0
        %1213 = vmatpush1.bf16.msra.mxu0 0
        %1214 = vmatprep.subr.bf16.mxu0 0
        %1215 = vmatpush1.bf16.msra.mxu0 0
        %1216 = vmatprep.subr.bf16.mxu0 0
        %1217 = vmatpush1.bf16.msra.mxu0 0
        %1218 = vmatprep.subr.bf16.mxu0 0
        %1219 = vmatpush1.bf16.msra.mxu0 0
        %1220 = vmatprep.subr.bf16.mxu0 0
        %1221 = vmatpush1.bf16.msra.mxu0 0
        %1222 = vmatprep.subr.bf16.mxu0 0
        %1223 = vmatpush1.bf16.msra.mxu0 0
        %1224 = vmatprep.subr.bf16.mxu0 0
        %1225 = vmatpush1.bf16.msra.mxu0 0
        %1226 = vmatprep.subr.bf16.mxu0 0
        %1227 = vmatpush1.bf16.msra.mxu0 0
        %1228 = vmatprep.subr.bf16.mxu0 0
        %1229 = vmatpush1.bf16.msra.mxu0 0
        %1230 = vmatprep.subr.bf16.mxu0 0
        %1231 = vmatpush1.bf16.msra.mxu0 0
        %1232 = vmatprep.mubr.bf16.mxu0 0
        %1233 = vmatmul.mubr.bf16.gmra.mrb[0].mxu0 %v431
        %v1234 = vpop.f32.mrb[0].mxu0
        %v1235 = vadd.f32 0.0, %v1234
        %v1236 = vpop.f32.mrb[0].mxu0
        %v1237 = vpop.f32.mrb[0].mxu0
        %v1238 = vpop.f32.mrb[0].mxu0
        %1239 = vdwg.mxu0
        %v1240 = vpack.c.bf16 %v1121, %v1121
        %v1241 = vpack.c.bf16 %v1178, %v1178
        %v1243 = vsel %vm587, %v1240, 0
        %v1246 = vsel %vm587, %v1241, 0
        %1248 = vmatprep.subr.bf16.mxu0 0
        %1249 = vmatpush1.bf16.xpose.msra.mxu0 %v1246
        %1250 = vmatprep.subr.bf16.mxu0 0
        %1251 = vmatpush1.bf16.xpose.msra.mxu0 0
        %1252 = vmatprep.subr.bf16.mxu0 0
        %1253 = vmatpush1.bf16.xpose.msra.mxu0 0
        %1254 = vmatprep.subr.bf16.mxu0 0
        %1255 = vmatpush1.bf16.xpose.msra.mxu0 0
        %1256 = vmatprep.subr.bf16.mxu0 0
        %1257 = vmatpush1.bf16.xpose.msra.mxu0 0
        %1258 = vmatprep.subr.bf16.mxu0 0
        %1259 = vmatpush1.bf16.xpose.msra.mxu0 0
        %1260 = vmatprep.subr.bf16.mxu0 0
        %1261 = vmatpush1.bf16.xpose.msra.mxu0 0
        %1262 = vmatprep.subr.bf16.mxu0 0
        %1263 = vmatpush1.bf16.xpose.msra.mxu0 0
        %1264 = vmatprep.subr.bf16.mxu0 0
        %1265 = vmatpush1.bf16.xpose.msra.mxu0 0
        %1266 = vmatprep.subr.bf16.mxu0 0
        %1267 = vmatpush1.bf16.xpose.msra.mxu0 0
        %1268 = vmatprep.subr.bf16.mxu0 0
        %1269 = vmatpush1.bf16.xpose.msra.mxu0 0
        %1270 = vmatprep.subr.bf16.mxu0 0
        %1271 = vmatpush1.bf16.xpose.msra.mxu0 0
        %1272 = vmatprep.subr.bf16.mxu0 0
        %1273 = vmatpush1.bf16.xpose.msra.mxu0 0
        %1274 = vmatprep.subr.bf16.mxu0 0
        %1275 = vmatpush1.bf16.xpose.msra.mxu0 0
        %1276 = vmatprep.subr.bf16.mxu0 0
        %1277 = vmatpush1.bf16.xpose.msra.mxu0 0
        %1278 = vmatprep.subr.bf16.mxu0 0
        %1279 = vmatpush1.bf16.xpose.msra.mxu0 0
        %1280 = vmatprep.mubr.bf16.mxu0 0
        %1281 = vmatmul.mubr.bf16.gmra.mrb[0].mxu0 %v1243
        %v1282 = vpop.f32.mrb[0].mxu0
        %v1283 = vadd.f32 %v412, %v1282
        %v1284 = vpop.f32.mrb[0].mxu0
        %v1285 = vpop.f32.mrb[0].mxu0
        %v1286 = vpop.f32.mrb[0].mxu0
        %1287 = vdwg.mxu0
        %v1288 = vsel %vm587, %v1283, -inf
        %1289 = vmax.xlane.f32.xlu0 %v1288
        %v1290 = vpop.xlane.xlu0 %1289
        %v1291 = vsub.f32 %v1283, %v1290
        %v1292 = vmul.f32 %v1291, 1.442695
        %v1293 = vpow.pop %v1292
        %v1294 = vsel %vm587, %v1293, 0.0
        %1295 = vadd.xlane.f32.xlu0 %v1294
        %v1296 = vpop.xlane.xlu0 %1295
        %v1297 = vrcp.pop %v1296
        %v1298 = vmul.f32 %v1293, %v1297
        %v1299 = vpack.c.bf16 %v1298, %v1298
        %v1300 = vpack.c.bf16 %v1235, %v1235
        %v1302 = vsel %vm587, %v1299, 0
        %v1305 = vsel %vm650, %v1300, 0
        %1307 = vmatprep.subr.bf16.mxu0 0
        %1308 = vmatpush1.bf16.msra.mxu0 %v1305
        %1309 = vmatprep.subr.bf16.mxu0 0
        %1310 = vmatpush1.bf16.msra.mxu0 0
        %1311 = vmatprep.subr.bf16.mxu0 0
        %1312 = vmatpush1.bf16.msra.mxu0 0
        %1313 = vmatprep.subr.bf16.mxu0 0
        %1314 = vmatpush1.bf16.msra.mxu0 0
        %1315 = vmatprep.subr.bf16.mxu0 0
        %1316 = vmatpush1.bf16.msra.mxu0 0
        %1317 = vmatprep.subr.bf16.mxu0 0
        %1318 = vmatpush1.bf16.msra.mxu0 0
        %1319 = vmatprep.subr.bf16.mxu0 0
        %1320 = vmatpush1.bf16.msra.mxu0 0
        %1321 = vmatprep.subr.bf16.mxu0 0
        %1322 = vmatpush1.bf16.msra.mxu0 0
        %1323 = vmatprep.subr.bf16.mxu0 0
        %1324 = vmatpush1.bf16.msra.mxu0 0
        %1325 = vmatprep.subr.bf16.mxu0 0
        %1326 = vmatpush1.bf16.msra.mxu0 0
        %1327 = vmatprep.subr.bf16.mxu0 0
        %1328 = vmatpush1.bf16.msra.mxu0 0
        %1329 = vmatprep.subr.bf16.mxu0 0
        %1330 = vmatpush1.bf16.msra.mxu0 0
        %1331 = vmatprep.subr.bf16.mxu0 0
        %1332 = vmatpush1.bf16.msra.mxu0 0
        %1333 = vmatprep.subr.bf16.mxu0 0
        %1334 = vmatpush1.bf16.msra.mxu0 0
        %1335 = vmatprep.subr.bf16.mxu0 0
        %1336 = vmatpush1.bf16.msra.mxu0 0
        %1337 = vmatprep.subr.bf16.mxu0 0
        %1338 = vmatpush1.bf16.msra.mxu0 0
        %1339 = vmatprep.mubr.bf16.mxu0 0
        %1340 = vmatmul.mubr.bf16.gmra.mrb[0].mxu0 %v1302
        %v1341 = vpop.f32.mrb[0].mxu0
        %v1342 = vadd.f32 0.0, %v1341
        %v1343 = vpop.f32.mrb[0].mxu0
        %v1344 = vpop.f32.mrb[0].mxu0
        %v1345 = vpop.f32.mrb[0].mxu0
        %1346 = vdwg.mxu0
        %v1347 = vpack.c.bf16 %v1342, %v1342
        %s1348 = scalar_lea.vmem %s5, 8
        %v1349 = vld [vmem:[%s1348] sm:$0xf]
        %v1351 = vsel %vm587, %v1347, 0
        %v1354 = vsel %vm650, %v1349, 0
        %1356 = vmatprep.subr.bf16.mxu0 0
        %1357 = vmatpush1.bf16.msra.mxu0 %v1354
        %1358 = vmatprep.subr.bf16.mxu0 0
        %1359 = vmatpush1.bf16.msra.mxu0 0
        %1360 = vmatprep.subr.bf16.mxu0 0
        %1361 = vmatpush1.bf16.msra.mxu0 0
        %1362 = vmatprep.subr.bf16.mxu0 0
        %1363 = vmatpush1.bf16.msra.mxu0 0
        %1364 = vmatprep.subr.bf16.mxu0 0
        %1365 = vmatpush1.bf16.msra.mxu0 0
        %1366 = vmatprep.subr.bf16.mxu0 0
        %1367 = vmatpush1.bf16.msra.mxu0 0
        %1368 = vmatprep.subr.bf16.mxu0 0
        %1369 = vmatpush1.bf16.msra.mxu0 0
        %1370 = vmatprep.subr.bf16.mxu0 0
        %1371 = vmatpush1.bf16.msra.mxu0 0
        %1372 = vmatprep.subr.bf16.mxu0 0
        %1373 = vmatpush1.bf16.msra.mxu0 0
        %1374 = vmatprep.subr.bf16.mxu0 0
        %1375 = vmatpush1.bf16.msra.mxu0 0
        %1376 = vmatprep.subr.bf16.mxu0 0
        %1377 = vmatpush1.bf16.msra.mxu0 0
        %1378 = vmatprep.subr.bf16.mxu0 0
        %1379 = vmatpush1.bf16.msra.mxu0 0
        %1380 = vmatprep.subr.bf16.mxu0 0
        %1381 = vmatpush1.bf16.msra.mxu0 0
        %1382 = vmatprep.subr.bf16.mxu0 0
        %1383 = vmatpush1.bf16.msra.mxu0 0
        %1384 = vmatprep.subr.bf16.mxu0 0
        %1385 = vmatpush1.bf16.msra.mxu0 0
        %1386 = vmatprep.subr.bf16.mxu0 0
        %1387 = vmatpush1.bf16.msra.mxu0 0
        %1388 = vmatprep.mubr.bf16.mxu0 0
        %1389 = vmatmul.mubr.bf16.gmra.mrb[0].mxu0 %v1351
        %v1390 = vpop.f32.mrb[0].mxu0
        %v1391 = vadd.f32 0.0, %v1390
        %v1392 = vpop.f32.mrb[0].mxu0
        %v1393 = vpop.f32.mrb[0].mxu0
        %v1394 = vpop.f32.mrb[0].mxu0
        %1395 = vdwg.mxu0
        %v1396 = vadd.f32 %v1064, %v1391
        %s1397 = scalar_lea.vmem %s2, 48
        %v1398 = vld [vmem:[%s1397] sm:$0xf]
        %v1399 = vld [vmem:[%s1397 + $0x4] sm:$0xf]
        %v1400 = vld [vmem:[%s1397 + $0x8] sm:$0xf]
        %v1401 = vld [vmem:[%s1397 + $0xc] sm:$0xf]
        %v1406 = vunpack.c.l.b16 %v1398
        %v1407 = vunpack.c.l.b16 %v1399
        %v1408 = vunpack.c.l.b16 %v1400
        %v1409 = vunpack.c.l.b16 %v1401
        %v1410 = vpack.c.b16 %v1407, %v1406
        %v1411 = vpack.c.b16 %v1409, %v1408
        %1414 = vmatprep.subr.bf16.mxu0 0
        %1415 = vmatpush1.bf16.msra.mxu0 %v1410
        %1416 = vmatprep.subr.bf16.mxu0 0
        %1417 = vmatpush1.bf16.msra.mxu0 %v1411
        %1418 = vmatprep.subr.bf16.mxu0 0
        %1419 = vmatpush1.bf16.msra.mxu0 0
        %1420 = vmatprep.subr.bf16.mxu0 0
        %1421 = vmatpush1.bf16.msra.mxu0 0
        %1422 = vmatprep.subr.bf16.mxu0 0
        %1423 = vmatpush1.bf16.msra.mxu0 0
        %1424 = vmatprep.subr.bf16.mxu0 0
        %1425 = vmatpush1.bf16.msra.mxu0 0
        %1426 = vmatprep.subr.bf16.mxu0 0
        %1427 = vmatpush1.bf16.msra.mxu0 0
        %1428 = vmatprep.subr.bf16.mxu0 0
        %1429 = vmatpush1.bf16.msra.mxu0 0
        %1430 = vmatprep.subr.bf16.mxu0 0
        %1431 = vmatpush1.bf16.msra.mxu0 0
        %1432 = vmatprep.subr.bf16.mxu0 0
        %1433 = vmatpush1.bf16.msra.mxu0 0
        %1434 = vmatprep.subr.bf16.mxu0 0
        %1435 = vmatpush1.bf16.msra.mxu0 0
        %1436 = vmatprep.subr.bf16.mxu0 0
        %1437 = vmatpush1.bf16.msra.mxu0 0
        %1438 = vmatprep.subr.bf16.mxu0 0
        %1439 = vmatpush1.bf16.msra.mxu0 0
        %1440 = vmatprep.subr.bf16.mxu0 0
        %1441 = vmatpush1.bf16.msra.mxu0 0
        %1442 = vmatprep.subr.bf16.mxu0 0
        %1443 = vmatpush1.bf16.msra.mxu0 0
        %1444 = vmatprep.subr.bf16.mxu0 0
        %1445 = vmatpush1.bf16.msra.mxu0 0
        %1446 = vmatprep.mubr.bf16.mxu0 0
        %1447 = vmatmul.mubr.bf16.gmra.mrb[0].mxu0 %v431
        %v1448 = vpop.f32.mrb[0].mxu0
        %v1449 = vadd.f32 0.0, %v1448
        %v1450 = vpop.f32.mrb[0].mxu0
        %v1451 = vpop.f32.mrb[0].mxu0
        %v1452 = vpop.f32.mrb[0].mxu0
        %1453 = vdwg.mxu0
        %s1454 = scalar_lea.vmem %s3, 48
        %v1455 = vld [vmem:[%s1454] sm:$0xf]
        %v1456 = vld [vmem:[%s1454 + $0x4] sm:$0xf]
        %v1457 = vld [vmem:[%s1454 + $0x8] sm:$0xf]
        %v1458 = vld [vmem:[%s1454 + $0xc] sm:$0xf]
        %v1463 = vunpack.c.l.b16 %v1455
        %v1464 = vunpack.c.l.b16 %v1456
        %v1465 = vunpack.c.l.b16 %v1457
        %v1466 = vunpack.c.l.b16 %v1458
        %v1467 = vpack.c.b16 %v1464, %v1463
        %v1468 = vpack.c.b16 %v1466, %v1465
        %1471 = vmatprep.subr.bf16.mxu0 0
        %1472 = vmatpush1.bf16.msra.mxu0 %v1467
        %1473 = vmatprep.subr.bf16.mxu0 0
        %1474 = vmatpush1.bf16.msra.mxu0 %v1468
        %1475 = vmatprep.subr.bf16.mxu0 0
        %1476 = vmatpush1.bf16.msra.mxu0 0
        %1477 = vmatprep.subr.bf16.mxu0 0
        %1478 = vmatpush1.bf16.msra.mxu0 0
        %1479 = vmatprep.subr.bf16.mxu0 0
        %1480 = vmatpush1.bf16.msra.mxu0 0
        %1481 = vmatprep.subr.bf16.mxu0 0
        %1482 = vmatpush1.bf16.msra.mxu0 0
        %1483 = vmatprep.subr.bf16.mxu0 0
        %1484 = vmatpush1.bf16.msra.mxu0 0
        %1485 = vmatprep.subr.bf16.mxu0 0
        %1486 = vmatpush1.bf16.msra.mxu0 0
        %1487 = vmatprep.subr.bf16.mxu0 0
        %1488 = vmatpush1.bf16.msra.mxu0 0
        %1489 = vmatprep.subr.bf16.mxu0 0
        %1490 = vmatpush1.bf16.msra.mxu0 0
        %1491 = vmatprep.subr.bf16.mxu0 0
        %1492 = vmatpush1.bf16.msra.mxu0 0
        %1493 = vmatprep.subr.bf16.mxu0 0
        %1494 = vmatpush1.bf16.msra.mxu0 0
        %1495 = vmatprep.subr.bf16.mxu0 0
        %1496 = vmatpush1.bf16.msra.mxu0 0
        %1497 = vmatprep.subr.bf16.mxu0 0
        %1498 = vmatpush1.bf16.msra.mxu0 0
        %1499 = vmatprep.subr.bf16.mxu0 0
        %1500 = vmatpush1.bf16.msra.mxu0 0
        %1501 = vmatprep.subr.bf16.mxu0 0
        %1502 = vmatpush1.bf16.msra.mxu0 0
        %1503 = vmatprep.mubr.bf16.mxu0 0
        %1504 = vmatmul.mubr.bf16.gmra.mrb[0].mxu0 %v431
        %v1505 = vpop.f32.mrb[0].mxu0
        %v1506 = vadd.f32 0.0, %v1505
        %v1507 = vpop.f32.mrb[0].mxu0
        %v1508 = vpop.f32.mrb[0].mxu0
        %v1509 = vpop.f32.mrb[0].mxu0
        %1510 = vdwg.mxu0
        %s1511 = scalar_lea.vmem %s4, 48
        %v1512 = vld [vmem:[%s1511] sm:$0xf]
        %v1513 = vld [vmem:[%s1511 + $0x4] sm:$0xf]
        %v1514 = vld [vmem:[%s1511 + $0x8] sm:$0xf]
        %v1515 = vld [vmem:[%s1511 + $0xc] sm:$0xf]
        %v1520 = vunpack.c.l.b16 %v1512
        %v1521 = vunpack.c.l.b16 %v1513
        %v1522 = vunpack.c.l.b16 %v1514
        %v1523 = vunpack.c.l.b16 %v1515
        %v1524 = vpack.c.b16 %v1521, %v1520
        %v1525 = vpack.c.b16 %v1523, %v1522
        %1528 = vmatprep.subr.bf16.mxu0 0
        %1529 = vmatpush1.bf16.msra.mxu0 %v1524
        %1530 = vmatprep.subr.bf16.mxu0 0
        %1531 = vmatpush1.bf16.msra.mxu0 %v1525
        %1532 = vmatprep.subr.bf16.mxu0 0
        %1533 = vmatpush1.bf16.msra.mxu0 0
        %1534 = vmatprep.subr.bf16.mxu0 0
        %1535 = vmatpush1.bf16.msra.mxu0 0
        %1536 = vmatprep.subr.bf16.mxu0 0
        %1537 = vmatpush1.bf16.msra.mxu0 0
        %1538 = vmatprep.subr.bf16.mxu0 0
        %1539 = vmatpush1.bf16.msra.mxu0 0
        %1540 = vmatprep.subr.bf16.mxu0 0
        %1541 = vmatpush1.bf16.msra.mxu0 0
        %1542 = vmatprep.subr.bf16.mxu0 0
        %1543 = vmatpush1.bf16.msra.mxu0 0
        %1544 = vmatprep.subr.bf16.mxu0 0
        %1545 = vmatpush1.bf16.msra.mxu0 0
        %1546 = vmatprep.subr.bf16.mxu0 0
        %1547 = vmatpush1.bf16.msra.mxu0 0
        %1548 = vmatprep.subr.bf16.mxu0 0
        %1549 = vmatpush1.bf16.msra.mxu0 0
        %1550 = vmatprep.subr.bf16.mxu0 0
        %1551 = vmatpush1.bf16.msra.mxu0 0
        %1552 = vmatprep.subr.bf16.mxu0 0
        %1553 = vmatpush1.bf16.msra.mxu0 0
        %1554 = vmatprep.subr.bf16.mxu0 0
        %1555 = vmatpush1.bf16.msra.mxu0 0
        %1556 = vmatprep.subr.bf16.mxu0 0
        %1557 = vmatpush1.bf16.msra.mxu0 0
        %1558 = vmatprep.subr.bf16.mxu0 0
        %1559 = vmatpush1.bf16.msra.mxu0 0
        %1560 = vmatprep.mubr.bf16.mxu0 0
        %1561 = vmatmul.mubr.bf16.gmra.mrb[0].mxu0 %v431
        %v1562 = vpop.f32.mrb[0].mxu0
        %v1563 = vadd.f32 0.0, %v1562
        %v1564 = vpop.f32.mrb[0].mxu0
        %v1565 = vpop.f32.mrb[0].mxu0
        %v1566 = vpop.f32.mrb[0].mxu0
        %1567 = vdwg.mxu0
        %v1568 = vpack.c.bf16 %v1449, %v1449
        %v1569 = vpack.c.bf16 %v1506, %v1506
        %v1571 = vsel %vm587, %v1568, 0
        %v1574 = vsel %vm587, %v1569, 0
        %1576 = vmatprep.subr.bf16.mxu0 0
        %1577 = vmatpush1.bf16.xpose.msra.mxu0 %v1574
        %1578 = vmatprep.subr.bf16.mxu0 0
        %1579 = vmatpush1.bf16.xpose.msra.mxu0 0
        %1580 = vmatprep.subr.bf16.mxu0 0
        %1581 = vmatpush1.bf16.xpose.msra.mxu0 0
        %1582 = vmatprep.subr.bf16.mxu0 0
        %1583 = vmatpush1.bf16.xpose.msra.mxu0 0
        %1584 = vmatprep.subr.bf16.mxu0 0
        %1585 = vmatpush1.bf16.xpose.msra.mxu0 0
        %1586 = vmatprep.subr.bf16.mxu0 0
        %1587 = vmatpush1.bf16.xpose.msra.mxu0 0
        %1588 = vmatprep.subr.bf16.mxu0 0
        %1589 = vmatpush1.bf16.xpose.msra.mxu0 0
        %1590 = vmatprep.subr.bf16.mxu0 0
        %1591 = vmatpush1.bf16.xpose.msra.mxu0 0
        %1592 = vmatprep.subr.bf16.mxu0 0
        %1593 = vmatpush1.bf16.xpose.msra.mxu0 0
        %1594 = vmatprep.subr.bf16.mxu0 0
        %1595 = vmatpush1.bf16.xpose.msra.mxu0 0
        %1596 = vmatprep.subr.bf16.mxu0 0
        %1597 = vmatpush1.bf16.xpose.msra.mxu0 0
        %1598 = vmatprep.subr.bf16.mxu0 0
        %1599 = vmatpush1.bf16.xpose.msra.mxu0 0
        %1600 = vmatprep.subr.bf16.mxu0 0
        %1601 = vmatpush1.bf16.xpose.msra.mxu0 0
        %1602 = vmatprep.subr.bf16.mxu0 0
        %1603 = vmatpush1.bf16.xpose.msra.mxu0 0
        %1604 = vmatprep.subr.bf16.mxu0 0
        %1605 = vmatpush1.bf16.xpose.msra.mxu0 0
        %1606 = vmatprep.subr.bf16.mxu0 0
        %1607 = vmatpush1.bf16.xpose.msra.mxu0 0
        %1608 = vmatprep.mubr.bf16.mxu0 0
        %1609 = vmatmul.mubr.bf16.gmra.mrb[0].mxu0 %v1571
        %v1610 = vpop.f32.mrb[0].mxu0
        %v1611 = vadd.f32 %v412, %v1610
        %v1612 = vpop.f32.mrb[0].mxu0
        %v1613 = vpop.f32.mrb[0].mxu0
        %v1614 = vpop.f32.mrb[0].mxu0
        %1615 = vdwg.mxu0
        %v1616 = vsel %vm587, %v1611, -inf
        %1617 = vmax.xlane.f32.xlu0 %v1616
        %v1618 = vpop.xlane.xlu0 %1617
        %v1619 = vsub.f32 %v1611, %v1618
        %v1620 = vmul.f32 %v1619, 1.442695
        %v1621 = vpow.pop %v1620
        %v1622 = vsel %vm587, %v1621, 0.0
        %1623 = vadd.xlane.f32.xlu0 %v1622
        %v1624 = vpop.xlane.xlu0 %1623
        %v1625 = vrcp.pop %v1624
        %v1626 = vmul.f32 %v1621, %v1625
        %v1627 = vpack.c.bf16 %v1626, %v1626
        %v1628 = vpack.c.bf16 %v1563, %v1563
        %v1630 = vsel %vm587, %v1627, 0
        %v1633 = vsel %vm650, %v1628, 0
        %1635 = vmatprep.subr.bf16.mxu0 0
        %1636 = vmatpush1.bf16.msra.mxu0 %v1633
        %1637 = vmatprep.subr.bf16.mxu0 0
        %1638 = vmatpush1.bf16.msra.mxu0 0
        %1639 = vmatprep.subr.bf16.mxu0 0
        %1640 = vmatpush1.bf16.msra.mxu0 0
        %1641 = vmatprep.subr.bf16.mxu0 0
        %1642 = vmatpush1.bf16.msra.mxu0 0
        %1643 = vmatprep.subr.bf16.mxu0 0
        %1644 = vmatpush1.bf16.msra.mxu0 0
        %1645 = vmatprep.subr.bf16.mxu0 0
        %1646 = vmatpush1.bf16.msra.mxu0 0
        %1647 = vmatprep.subr.bf16.mxu0 0
        %1648 = vmatpush1.bf16.msra.mxu0 0
        %1649 = vmatprep.subr.bf16.mxu0 0
        %1650 = vmatpush1.bf16.msra.mxu0 0
        %1651 = vmatprep.subr.bf16.mxu0 0
        %1652 = vmatpush1.bf16.msra.mxu0 0
        %1653 = vmatprep.subr.bf16.mxu0 0
        %1654 = vmatpush1.bf16.msra.mxu0 0
        %1655 = vmatprep.subr.bf16.mxu0 0
        %1656 = vmatpush1.bf16.msra.mxu0 0
        %1657 = vmatprep.subr.bf16.mxu0 0
        %1658 = vmatpush1.bf16.msra.mxu0 0
        %1659 = vmatprep.subr.bf16.mxu0 0
        %1660 = vmatpush1.bf16.msra.mxu0 0
        %1661 = vmatprep.subr.bf16.mxu0 0
        %1662 = vmatpush1.bf16.msra.mxu0 0
        %1663 = vmatprep.subr.bf16.mxu0 0
        %1664 = vmatpush1.bf16.msra.mxu0 0
        %1665 = vmatprep.subr.bf16.mxu0 0
        %1666 = vmatpush1.bf16.msra.mxu0 0
        %1667 = vmatprep.mubr.bf16.mxu0 0
        %1668 = vmatmul.mubr.bf16.gmra.mrb[0].mxu0 %v1630
        %v1669 = vpop.f32.mrb[0].mxu0
        %v1670 = vadd.f32 0.0, %v1669
        %v1671 = vpop.f32.mrb[0].mxu0
        %v1672 = vpop.f32.mrb[0].mxu0
        %v1673 = vpop.f32.mrb[0].mxu0
        %1674 = vdwg.mxu0
        %v1675 = vpack.c.bf16 %v1670, %v1670
        %s1676 = scalar_lea.vmem %s5, 12
        %v1677 = vld [vmem:[%s1676] sm:$0xf]
        %v1679 = vsel %vm587, %v1675, 0
        %v1682 = vsel %vm650, %v1677, 0
        %1684 = vmatprep.subr.bf16.mxu0 0
        %1685 = vmatpush1.bf16.msra.mxu0 %v1682
        %1686 = vmatprep.subr.bf16.mxu0 0
        %1687 = vmatpush1.bf16.msra.mxu0 0
        %1688 = vmatprep.subr.bf16.mxu0 0
        %1689 = vmatpush1.bf16.msra.mxu0 0
        %1690 = vmatprep.subr.bf16.mxu0 0
        %1691 = vmatpush1.bf16.msra.mxu0 0
        %1692 = vmatprep.subr.bf16.mxu0 0
        %1693 = vmatpush1.bf16.msra.mxu0 0
        %1694 = vmatprep.subr.bf16.mxu0 0
        %1695 = vmatpush1.bf16.msra.mxu0 0
        %1696 = vmatprep.subr.bf16.mxu0 0
        %1697 = vmatpush1.bf16.msra.mxu0 0
        %1698 = vmatprep.subr.bf16.mxu0 0
        %1699 = vmatpush1.bf16.msra.mxu0 0
        %1700 = vmatprep.subr.bf16.mxu0 0
        %1701 = vmatpush1.bf16.msra.mxu0 0
        %1702 = vmatprep.subr.bf16.mxu0 0
        %1703 = vmatpush1.bf16.msra.mxu0 0
        %1704 = vmatprep.subr.bf16.mxu0 0
        %1705 = vmatpush1.bf16.msra.mxu0 0
        %1706 = vmatprep.subr.bf16.mxu0 0
        %1707 = vmatpush1.bf16.msra.mxu0 0
        %1708 = vmatprep.subr.bf16.mxu0 0
        %1709 = vmatpush1.bf16.msra.mxu0 0
        %1710 = vmatprep.subr.bf16.mxu0 0
        %1711 = vmatpush1.bf16.msra.mxu0 0
        %1712 = vmatprep.subr.bf16.mxu0 0
        %1713 = vmatpush1.bf16.msra.mxu0 0
        %1714 = vmatprep.subr.bf16.mxu0 0
        %1715 = vmatpush1.bf16.msra.mxu0 0
        %1716 = vmatprep.mubr.bf16.mxu0 0
        %1717 = vmatmul.mubr.bf16.gmra.mrb[0].mxu0 %v1679
        %v1718 = vpop.f32.mrb[0].mxu0
        %v1719 = vadd.f32 0.0, %v1718
        %v1720 = vpop.f32.mrb[0].mxu0
        %v1721 = vpop.f32.mrb[0].mxu0
        %v1722 = vpop.f32.mrb[0].mxu0
        %1723 = vdwg.mxu0
        %v1724 = vadd.f32 %v1396, %v1719
        %v1725 = vadd.f32 %v410, %v1724
        %v1726 = vld [vmem:[%s10] sm:$0x1]
        %v1727 = vld [vmem:[%s11] sm:$0x1]
        %v1728 = vsel %vm429, %v1725, 0.0
        %1729 = vadd.xlane.f32.xlu0 %v1728
        %v1730 = vpop.xlane.xlu0 %1729
        %v1731 = vrcp.pop 32.0
        %v1732 = vmul.f32 %v1730, %v1731
        %v1733 = vsub.f32 %v1725, %v1732
        %v1734 = vmul.f32 %v1733, %v1733
        %v1735 = vsel %vm429, %v1734, 0.0
        %1736 = vadd.xlane.f32.xlu0 %v1735
        %v1737 = vpop.xlane.xlu0 %1736
        %v1738 = vmul.f32 %v1737, 0.032258064
        %v1739 = vlaneseq
        %v1740 = vshrl.u32 %v1739, 7
        %v1741 = vsub.s32 0, %v1740
        %v1742 = vrot.slane %v1726, %v1741
        %v1743 = vmul.f32 %v1742, %v1733
        %v1744 = vrsqrt.pop %v1738
        %v1745 = vmul.f32 %v1738, %v1744
        %vm1746 = vcmp.eq.f32.partialorder %v1738, inf
        %v1747 = vsel %vm1746, %v1738, %v1745
        %vm1748 = vcmp.eq.f32.partialorder %v1738, 0.0
        %v1749 = vand.u32 %v1738, 2147483648
        %v1750 = vsel %vm1748, %v1749, %v1747
        %v1751 = vadd.f32 %v1750, 1e-06
        %v1752 = vrcp.pop %v1751
        %v1753 = vmul.f32 %v1743, %v1752
        %v1754 = vlaneseq
        %v1755 = vshrl.u32 %v1754, 7
        %v1756 = vsub.s32 0, %v1755
        %v1757 = vrot.slane %v1727, %v1756
        %v1758 = vadd.f32 %v1753, %v1757
        %v1759 = vpack.c.bf16 %v1758, %v1758
        %v1760 = vld [vmem:[%s6] sm:$0xf]
        %v1761 = vld [vmem:[%s6 + $0x4] sm:$0xf]
        %v1762 = vld [vmem:[%s6 + $0x8] sm:$0xf]
        %v1763 = vld [vmem:[%s6 + $0xc] sm:$0xf]
        %v1764 = vld [vmem:[%s7] sm:$0x1]
        %v1766 = vlaneseq
        %v1767 = vshrl.u32 %v1766, 7
        %v1768 = vsub.s32 0, %v1767
        %v1769 = vrot.slane %v1764, %v1768
        %v1775 = vunpack.c.l.b16 %v1760
        %v1776 = vunpack.c.l.b16 %v1761
        %v1777 = vunpack.c.l.b16 %v1762
        %v1778 = vunpack.c.l.b16 %v1763
        %v1779 = vpack.c.b16 %v1776, %v1775
        %v1780 = vpack.c.b16 %v1778, %v1777
        %v1784 = vsel %vm429, %v1759, 0
        %1786 = vmatprep.subr.bf16.mxu0 0
        %1787 = vmatpush1.bf16.msra.mxu0 %v1779
        %1788 = vmatprep.subr.bf16.mxu0 0
        %1789 = vmatpush1.bf16.msra.mxu0 %v1780
        %1790 = vmatprep.subr.bf16.mxu0 0
        %1791 = vmatpush1.bf16.msra.mxu0 0
        %1792 = vmatprep.subr.bf16.mxu0 0
        %1793 = vmatpush1.bf16.msra.mxu0 0
        %1794 = vmatprep.subr.bf16.mxu0 0
        %1795 = vmatpush1.bf16.msra.mxu0 0
        %1796 = vmatprep.subr.bf16.mxu0 0
        %1797 = vmatpush1.bf16.msra.mxu0 0
        %1798 = vmatprep.subr.bf16.mxu0 0
        %1799 = vmatpush1.bf16.msra.mxu0 0
        %1800 = vmatprep.subr.bf16.mxu0 0
        %1801 = vmatpush1.bf16.msra.mxu0 0
        %1802 = vmatprep.subr.bf16.mxu0 0
        %1803 = vmatpush1.bf16.msra.mxu0 0
        %1804 = vmatprep.subr.bf16.mxu0 0
        %1805 = vmatpush1.bf16.msra.mxu0 0
        %1806 = vmatprep.subr.bf16.mxu0 0
        %1807 = vmatpush1.bf16.msra.mxu0 0
        %1808 = vmatprep.subr.bf16.mxu0 0
        %1809 = vmatpush1.bf16.msra.mxu0 0
        %1810 = vmatprep.subr.bf16.mxu0 0
        %1811 = vmatpush1.bf16.msra.mxu0 0
        %1812 = vmatprep.subr.bf16.mxu0 0
        %1813 = vmatpush1.bf16.msra.mxu0 0
        %1814 = vmatprep.subr.bf16.mxu0 0
        %1815 = vmatpush1.bf16.msra.mxu0 0
        %1816 = vmatprep.subr.bf16.mxu0 0
        %1817 = vmatpush1.bf16.msra.mxu0 0
        %1818 = vmatprep.mubr.bf16.mxu0 0
        %1819 = vmatmul.mubr.bf16.gmra.mrb[0].mxu0 %v1784
        %v1820 = vpop.f32.mrb[0].mxu0
        %v1821 = vadd.f32 %v1769, %v1820
        %v1822 = vpop.f32.mrb[0].mxu0
        %v1823 = vpop.f32.mrb[0].mxu0
        %v1824 = vpop.f32.mrb[0].mxu0
        %1825 = vdwg.mxu0
        %v1826 = vmax.f32 %v1821, 0.0
        %v1827 = vpack.c.bf16 %v1826, %v1826
        %v1828 = vld [vmem:[%s8] sm:$0xf]
        %v1829 = vld [vmem:[%s8 + $0x4] sm:$0xf]
        %v1830 = vld [vmem:[%s8 + $0x8] sm:$0xf]
        %v1831 = vld [vmem:[%s8 + $0xc] sm:$0xf]
        %v1832 = vld [vmem:[%s8 + $0x10] sm:$0xf]
        %v1833 = vld [vmem:[%s8 + $0x14] sm:$0xf]
        %v1834 = vld [vmem:[%s8 + $0x18] sm:$0xf]
        %v1835 = vld [vmem:[%s8 + $0x1c] sm:$0xf]
        %v1836 = vld [vmem:[%s9] sm:$0x1]
        %v1838 = vlaneseq
        %v1839 = vshrl.u32 %v1838, 7
        %v1840 = vsub.s32 0, %v1839
        %v1841 = vrot.slane %v1836, %v1840
        %v1851 = vunpack.c.l.b16 %v1828
        %v1852 = vunpack.c.l.b16 %v1829
        %v1853 = vunpack.c.l.b16 %v1830
        %v1854 = vunpack.c.l.b16 %v1831
        %v1855 = vunpack.c.l.b16 %v1832
        %v1856 = vunpack.c.l.b16 %v1833
        %v1857 = vunpack.c.l.b16 %v1834
        %v1858 = vunpack.c.l.b16 %v1835
        %v1859 = vpack.c.b16 %v1852, %v1851
        %v1860 = vpack.c.b16 %v1854, %v1853
        %v1861 = vpack.c.b16 %v1856, %v1855
        %v1862 = vpack.c.b16 %v1858, %v1857
        %vm1867 = vcmask 523264
        %v1869 = vsel %vm1867, %v1827, 0
        %1871 = vmatprep.subr.bf16.mxu0 0
        %1872 = vmatpush1.bf16.msra.mxu0 %v1859
        %1873 = vmatprep.subr.bf16.mxu0 0
        %1874 = vmatpush1.bf16.msra.mxu0 %v1860
        %1875 = vmatprep.subr.bf16.mxu0 0
        %1876 = vmatpush1.bf16.msra.mxu0 %v1861
        %1877 = vmatprep.subr.bf16.mxu0 0
        %1878 = vmatpush1.bf16.msra.mxu0 %v1862
        %1879 = vmatprep.subr.bf16.mxu0 0
        %1880 = vmatpush1.bf16.msra.mxu0 0
        %1881 = vmatprep.subr.bf16.mxu0 0
        %1882 = vmatpush1.bf16.msra.mxu0 0
        %1883 = vmatprep.subr.bf16.mxu0 0
        %1884 = vmatpush1.bf16.msra.mxu0 0
        %1885 = vmatprep.subr.bf16.mxu0 0
        %1886 = vmatpush1.bf16.msra.mxu0 0
        %1887 = vmatprep.subr.bf16.mxu0 0
        %1888 = vmatpush1.bf16.msra.mxu0 0
        %1889 = vmatprep.subr.bf16.mxu0 0
        %1890 = vmatpush1.bf16.msra.mxu0 0
        %1891 = vmatprep.subr.bf16.mxu0 0
        %1892 = vmatpush1.bf16.msra.mxu0 0
        %1893 = vmatprep.subr.bf16.mxu0 0
        %1894 = vmatpush1.bf16.msra.mxu0 0
        %1895 = vmatprep.subr.bf16.mxu0 0
        %1896 = vmatpush1.bf16.msra.mxu0 0
        %1897 = vmatprep.subr.bf16.mxu0 0
        %1898 = vmatpush1.bf16.msra.mxu0 0
        %1899 = vmatprep.subr.bf16.mxu0 0
        %1900 = vmatpush1.bf16.msra.mxu0 0
        %1901 = vmatprep.subr.bf16.mxu0 0
        %1902 = vmatpush1.bf16.msra.mxu0 0
        %1903 = vmatprep.mubr.bf16.mxu0 0
        %1904 = vmatmul.mubr.bf16.gmra.mrb[0].mxu0 %v1869
        %v1905 = vpop.f32.mrb[0].mxu0
        %v1906 = vadd.f32 %v1841, %v1905
        %v1907 = vpop.f32.mrb[0].mxu0
        %v1908 = vpop.f32.mrb[0].mxu0
        %v1909 = vpop.f32.mrb[0].mxu0
        %1910 = vdwg.mxu0
        %v1911 = vadd.f32 %v1758, %v1906
        %v1912 = vld [vmem:[%s10 + $0x1] sm:$0x1]
        %v1913 = vld [vmem:[%s11 + $0x1] sm:$0x1]
        %v1914 = vsel %vm429, %v1911, 0.0
        %1915 = vadd.xlane.f32.xlu0 %v1914
        %v1916 = vpop.xlane.xlu0 %1915
        %v1917 = vmul.f32 %v1916, %v1731
        %v1918 = vsub.f32 %v1911, %v1917
        %v1919 = vmul.f32 %v1918, %v1918
        %v1920 = vsel %vm429, %v1919, 0.0
        %1921 = vadd.xlane.f32.xlu0 %v1920
        %v1922 = vpop.xlane.xlu0 %1921
        %v1923 = vmul.f32 %v1922, 0.032258064
        %v1924 = vlaneseq
        %v1925 = vshrl.u32 %v1924, 7
        %v1926 = vsub.s32 0, %v1925
        %v1927 = vrot.slane %v1912, %v1926
        %v1928 = vmul.f32 %v1927, %v1918
        %v1929 = vrsqrt.pop %v1923
        %v1930 = vmul.f32 %v1923, %v1929
        %vm1931 = vcmp.eq.f32.partialorder %v1923, inf
        %v1932 = vsel %vm1931, %v1923, %v1930
        %vm1933 = vcmp.eq.f32.partialorder %v1923, 0.0
        %v1934 = vand.u32 %v1923, 2147483648
        %v1935 = vsel %vm1933, %v1934, %v1932
        %v1936 = vadd.f32 %v1935, 1e-06
        %v1937 = vrcp.pop %v1936
        %v1938 = vmul.f32 %v1928, %v1937
        %v1939 = vlaneseq
        %v1940 = vshrl.u32 %v1939, 7
        %v1941 = vsub.s32 0, %v1940
        %v1942 = vrot.slane %v1913, %v1941
        %v1943 = vadd.f32 %v1938, %v1942
        %1944 = vst.msk [vmem:[%s404] sm:$0xff] %vm429, %v1943
        %s1945 = sand.u32 %s291, 1
        %s1946 = scalar_lea.sflag [#allocation3], %s1945
        %s1947 = sand.u32 %s291, 1
        %s1948 = smul.addr %s1947, 8
        %s1949 = scalar_lea.vmem [#allocation2], %s1948
        // Predicated region
        $region69: #{tpu_custom_call.1} parent=67 // pred_check
          %p1950 = pneg %p301
        $region70: #{tpu_custom_call.1} parent=67 // pred_check_branch
          %1952 = sbr.rel (%p1950) target = $region72
        $region71: #{tpu_custom_call.1} parent=67 // pred_region
          %s1954 = ssub.s32 128, 128
          %1955 = vsyncadd %s1946, %s1954
          %s1956 = smul.addr %s26, 128
          %s1957 = scalar_lea.hbm %s12, %s1956
          %s1959 = sshll.u32 %s1949, 4
          %s1960 = int_to_ptr.vmem [resolvable:$true] %s1959
          %1962 = dma.vmem_to_hbm [thread:$0]  %s1960, 128, %s1957, %s1946
        $region72: #{tpu_custom_call.1} parent=67 // pred_fallthru
          _
      $region68: #{tpu_custom_call.1} parent=5 // pred_fallthru
        _
      %p1963 = scmp.le.s32.totalorder 2, %s21
      // Predicated region
      $region73: #{tpu_custom_call.1} parent=5 // pred_check
        %p1964 = pneg %p1963
      $region74: #{tpu_custom_call.1} parent=5 // pred_check_branch
        %1966 = sbr.rel (%p1964) target = $region76
      $region75: #{tpu_custom_call.1} parent=5 // pred_region
        %s1967 = ssub.s32 %s21, 2
        // Predicated region
        $region77: #{tpu_custom_call.1} parent=75 // pred_check
          %p1968 = pneg %p307
        $region78: #{tpu_custom_call.1} parent=75 // pred_check_branch
          %1970 = sbr.rel (%p1968) target = $region80
        $region79: #{tpu_custom_call.1} parent=75 // pred_region
          %s1971 = sand.u32 %s292, 1
          %s1972 = scalar_lea.sflag [#allocation3], %s1971
          %s1973 = sand.u32 %s292, 1
          %s1974 = smul.addr %s1973, 8
          %s1975 = scalar_lea.vmem [#allocation2], %s1974
          %1976 = dma.done %s1972, 128
        $region80: #{tpu_custom_call.1} parent=75 // pred_fallthru
          _
      $region76: #{tpu_custom_call.1} parent=5 // pred_fallthru
        _
    $region6: #{tpu_custom_call.1} parent=1 // loop_footer
      %s25 = sadd.s32 1, %s21
    $region7: #{tpu_custom_call.1} parent=1 // loop_footer_branch
      %20 = sbr.rel target = $region3
    $region8: #{tpu_custom_call.1} parent=1 // loop_exit
      _
    %1977 = vsyncpa [#allocation3], 1
    %s1978 = scalar_lea.sflag [#allocation3], 1
    %1979 = vsyncpa %s1978, 1

</llo_original>
